<compile_context>
chip_gen: v6e
topology: v6e:2x2x1
jax: 0.10.0
libtpu: 0.0.40
codegen_flags: <defaults>
</compile_context>

<pallas_src>
import functools

import jax
import jax.numpy as jnp
from jax import lax
from jax.experimental import pallas as pl
from jax.experimental.pallas import tpu as pltpu


def _gru_kernel(xs_ref, wih_ref, whh_ref, bcomb_ref, bhhn_ref, out_ref, *, T):
    """Whole GRU (all T steps) in one kernel invocation.

    xs_ref    : (T*Bp, D)   f32, time-major, batch padded to Bp (multiple of 8)
    wih_ref   : (D, 3*Hp)   f32, per-gate lane-padded ([r | z | n], each Hp wide)
    whh_ref   : (Hp, 3*Hp)  f32, rows beyond H zero-padded
    bcomb_ref : (1, 3*Hp)   f32, b_ih (all gates) + b_hh (r,z gates only)
    bhhn_ref  : (1, Hp)     f32, b_hh n-gate part (must stay inside r*(...))
    out_ref   : (B, H)      f32, final hidden state == output[:, -1]
    """
    TB, D = xs_ref.shape
    Bp = TB // T
    Hp = whh_ref.shape[0]
    G3 = whh_ref.shape[1]
    B, H = out_ref.shape

    wih = wih_ref[...]
    whh = whh_ref[...]
    # Hoist bias broadcasts out of the time loop (broadcast_in_dim is not CSE'd).
    bcomb = jnp.broadcast_to(bcomb_ref[...], (TB, G3))
    bhhn = jnp.broadcast_to(bhhn_ref[...], (Bp, Hp))

    # One batched input projection for all T timesteps: independent of h, so it
    # sits OFF the serial recurrence chain and pipelines freely through the MXU.
    gi_all = jnp.dot(xs_ref[...], wih, preferred_element_type=jnp.float32) + bcomb

    # Serial recurrence: one (Bp, Hp) @ (Hp, 3*Hp) matmul + gate math per step.
    h = jnp.zeros((Bp, Hp), dtype=jnp.float32)
    for t in range(T):
        gi = gi_all[t * Bp:(t + 1) * Bp, :]          # sublane-aligned vreg view
        gh = jnp.dot(h, whh, preferred_element_type=jnp.float32)
        # Gate slices are lane-aligned (offsets 0 / Hp / 2*Hp, multiples of 128).
        r = jax.nn.sigmoid(gi[:, 0:Hp] + gh[:, 0:Hp])
        z = jax.nn.sigmoid(gi[:, Hp:2 * Hp] + gh[:, Hp:2 * Hp])
        n = jnp.tanh(gi[:, 2 * Hp:G3] + r * (gh[:, 2 * Hp:G3] + bhhn))
        h = (1.0 - z) * n + z * h                    # PyTorch GRU cell semantics
        # Padded lanes: gi/gh/bhhn pads are 0 -> n_pad = 0, h_pad stays exactly 0.
        # Padded batch rows evolve independently and are discarded below.

    # Single store at the end (no per-step lane-sparse store on the serial path).
    out_ref[...] = h[:B, :H].astype(out_ref.dtype)


def _pack_gate_weight(w, Hp):
    """(3H, K) PyTorch-layout weight -> (K, 3*Hp), each gate lane-padded to Hp."""
    three_h, _ = w.shape
    H = three_h // 3
    cols = []
    for g in range(3):
        blk = jnp.transpose(w[g * H:(g + 1) * H, :])            # (K, H)
        cols.append(jnp.pad(blk, ((0, 0), (0, Hp - H))))
    return jnp.concatenate(cols, axis=1).astype(jnp.float32)


def _pack_gate_bias(b, Hp):
    """(3H,) -> (1, 3*Hp), each gate lane-padded to Hp."""
    H = b.shape[0] // 3
    parts = [jnp.pad(b[g * H:(g + 1) * H], (0, Hp - H)) for g in range(3)]
    return jnp.concatenate(parts).reshape(1, 3 * Hp).astype(jnp.float32)


@jax.jit
def question_embedding_forward(x, w_ih, w_hh, b_ih, b_hh):
    """x: (B, T, in_dim) batch_first; PyTorch-shaped GRU params:
       w_ih (3H, in_dim), w_hh (3H, H), b_ih (3H,), b_hh (3H,).
       Returns (B, H) == output[:, -1] of the unidirectional GRU (h0 = 0)."""
    B, T, D = x.shape
    H = w_hh.shape[1]
    Hp = ((H + 127) // 128) * 128            # lane-align each gate block
    Bp = ((B + 7) // 8) * 8                  # sublane-align the batch

    x_f32 = x.astype(jnp.float32)
    # Time-major, batch padded to a sublane multiple -> per-step slices of the
    # batched input projection are clean vreg views inside the kernel.  The whole
    # packed input is ~T*Bp*D*4 bytes (tiny, trivially VMEM-resident).
    xs = jnp.transpose(x_f32, (1, 0, 2))                                 # (T, B, D)
    xs = jnp.pad(xs, ((0, 0), (0, Bp - B), (0, 0))).reshape(T * Bp, D)   # (T*Bp, D)

    wih_p = _pack_gate_weight(w_ih, Hp)                                  # (D, 3Hp)
    whh_p = jnp.pad(_pack_gate_weight(w_hh, Hp), ((0, Hp - H), (0, 0)))  # (Hp, 3Hp)
    bih_p = _pack_gate_bias(b_ih, Hp)                                    # (1, 3Hp)
    bhh_p = _pack_gate_bias(b_hh, Hp)                                    # (1, 3Hp)
    # Fold b_hh's r/z parts into the once-per-sequence input bias; only the
    # n-gate hidden bias must stay inside the per-step recurrence.
    bcomb = bih_p.at[:, :2 * Hp].add(bhh_p[:, :2 * Hp])                  # (1, 3Hp)
    bhhn = bhh_p[:, 2 * Hp:]                                             # (1, Hp)

    vmem_spec = pl.BlockSpec(memory_space=pltpu.MemorySpace.VMEM)
    kernel = functools.partial(_gru_kernel, T=T)
    return pl.pallas_call(
        kernel,
        out_shape=jax.ShapeDtypeStruct((B, H), jnp.float32),
        in_specs=[vmem_spec] * 5,
        out_specs=vmem_spec,
    )(xs, wih_p, whh_p, bcomb, bhhn)


def _gru_reference(x, w_ih, w_hh, b_ih, b_hh):
    """Pure-JAX reference (PyTorch nn.GRU, 1 layer, unidirectional, h0=0)."""
    B, T, D = x.shape
    H = w_hh.shape[1]

    def step(h, x_t):
        gi = x_t @ w_ih.T + b_ih
        gh = h @ w_hh.T + b_hh
        i_r, i_z, i_n = gi[:, :H], gi[:, H:2 * H], gi[:, 2 * H:]
        h_r, h_z, h_n = gh[:, :H], gh[:, H:2 * H], gh[:, 2 * H:]
        r = jax.nn.sigmoid(i_r + h_r)
        z = jax.nn.sigmoid(i_z + h_z)
        n = jnp.tanh(i_n + r * h_n)
        h_new = (1.0 - z) * n + z * h
        return h_new, None

    h0 = jnp.zeros((B, H), jnp.float32)
    h_last, _ = lax.scan(step, h0, jnp.transpose(x, (1, 0, 2)))
    return h_last


if __name__ == "__main__":
    # Module config: in_dim=32, num_hid=32, nlayers=1, bidirect=False, dropout=0, GRU.
    B, T, in_dim, num_hid = 2, 8, 32, 32

    key = jax.random.PRNGKey(0)
    kx, k1, k2, k3, k4 = jax.random.split(key, 5)

    scale = 1.0 / jnp.sqrt(num_hid)
    x = jax.random.normal(kx, (B, T, in_dim), jnp.float32)
    w_ih = jax.random.uniform(k1, (3 * num_hid, in_dim), jnp.float32, -scale, scale)
    w_hh = jax.random.uniform(k2, (3 * num_hid, num_hid), jnp.float32, -scale, scale)
    b_ih = jax.random.uniform(k3, (3 * num_hid,), jnp.float32, -scale, scale)
    b_hh = jax.random.uniform(k4, (3 * num_hid,), jnp.float32, -scale, scale)

    out = question_embedding_forward(x, w_ih, w_hh, b_ih, b_hh)
    out = jax.block_until_ready(out)

    ref = _gru_reference(x, w_ih, w_hh, b_ih, b_hh)
    assert out.shape == (B, num_hid)
    assert jnp.allclose(out, ref, atol=1e-5, rtol=1e-5), "mismatch vs JAX GRU reference"

    print("KERNEL_OK")
</pallas_src>

<mosaic_0001>
module attributes {stable_mosaic.version = 11 : i64} {
  func.func @_gru_kernel(%arg0: memref<64x32xf32, #tpu.memory_space<vmem>>, %arg1: memref<32x384xf32, #tpu.memory_space<vmem>>, %arg2: memref<128x384xf32, #tpu.memory_space<vmem>>, %arg3: memref<1x384xf32, #tpu.memory_space<vmem>>, %arg4: memref<1x128xf32, #tpu.memory_space<vmem>>, %arg5: memref<2x32xf32, #tpu.memory_space<vmem>>) attributes {dimension_semantics = [], scalar_prefetch = 0 : i64, scratch_operands = 0 : i64, tpu.core_type = #tpu.core_type<tc>} {
    %c0 = arith.constant 0 : index
    %c0_0 = arith.constant 0 : index
    %0 = vector.load %arg1[%c0, %c0_0] : memref<32x384xf32, #tpu.memory_space<vmem>>, vector<32x384xf32>
    %c0_1 = arith.constant 0 : index
    %c0_2 = arith.constant 0 : index
    %1 = vector.load %arg2[%c0_1, %c0_2] : memref<128x384xf32, #tpu.memory_space<vmem>>, vector<128x384xf32>
    %c0_3 = arith.constant 0 : index
    %c0_4 = arith.constant 0 : index
    %2 = vector.load %arg3[%c0_3, %c0_4] : memref<1x384xf32, #tpu.memory_space<vmem>>, vector<1x384xf32>
    %3 = vector.shape_cast %2 : vector<1x384xf32> to vector<1x384xf32>
    %4 = vector.broadcast %3 : vector<1x384xf32> to vector<64x384xf32>
    %c0_5 = arith.constant 0 : index
    %c0_6 = arith.constant 0 : index
    %5 = vector.load %arg4[%c0_5, %c0_6] : memref<1x128xf32, #tpu.memory_space<vmem>>, vector<1x128xf32>
    %6 = vector.shape_cast %5 : vector<1x128xf32> to vector<1x128xf32>
    %7 = vector.broadcast %6 : vector<1x128xf32> to vector<8x128xf32>
    %c0_7 = arith.constant 0 : index
    %c0_8 = arith.constant 0 : index
    %8 = vector.load %arg0[%c0_7, %c0_8] : memref<64x32xf32, #tpu.memory_space<vmem>>, vector<64x32xf32>
    %cst = arith.constant dense<0.000000e+00> : vector<64x384xf32>
    %9 = tpu.matmul %8, %0, %cst {dimension_numbers = #tpu.dot_dimension_numbers<[1], [0], [0], [1], [0, 0, 1, 1], [], []>} : vector<64x32xf32>, vector<32x384xf32>, vector<64x384xf32> -> vector<64x384xf32>
    %10 = arith.addf %9, %4 : vector<64x384xf32>
    %cst_9 = arith.constant 0.000000e+00 : f32
    %11 = vector.broadcast %cst_9 : f32 to vector<8x128xf32>
    %12 = vector.extract_strided_slice %10 {offsets = [0, 0], sizes = [8, 384], strides = [1, 1]} : vector<64x384xf32> to vector<8x384xf32>
    %cst_10 = arith.constant dense<0.000000e+00> : vector<8x384xf32>
    %13 = tpu.matmul %11, %1, %cst_10 {dimension_numbers = #tpu.dot_dimension_numbers<[1], [0], [0], [1], [0, 0, 1, 1], [], []>} : vector<8x128xf32>, vector<128x384xf32>, vector<8x384xf32> -> vector<8x384xf32>
    %14 = vector.extract_strided_slice %12 {offsets = [0, 0], sizes = [8, 128], strides = [1, 1]} : vector<8x384xf32> to vector<8x128xf32>
    %15 = vector.extract_strided_slice %13 {offsets = [0, 0], sizes = [8, 128], strides = [1, 1]} : vector<8x384xf32> to vector<8x128xf32>
    %16 = arith.addf %14, %15 : vector<8x128xf32>
    %17 = arith.negf %16 : vector<8x128xf32>
    %18 = math.exp %17 : vector<8x128xf32>
    %cst_11 = arith.constant 1.000000e+00 : f32
    %19 = vector.broadcast %cst_11 : f32 to vector<8x128xf32>
    %20 = arith.addf %19, %18 : vector<8x128xf32>
    %21 = arith.divf %19, %20 : vector<8x128xf32>
    %22 = vector.extract_strided_slice %12 {offsets = [0, 128], sizes = [8, 128], strides = [1, 1]} : vector<8x384xf32> to vector<8x128xf32>
    %23 = vector.extract_strided_slice %13 {offsets = [0, 128], sizes = [8, 128], strides = [1, 1]} : vector<8x384xf32> to vector<8x128xf32>
    %24 = arith.addf %22, %23 : vector<8x128xf32>
    %25 = arith.negf %24 : vector<8x128xf32>
    %26 = math.exp %25 : vector<8x128xf32>
    %cst_12 = arith.constant 1.000000e+00 : f32
    %27 = vector.broadcast %cst_12 : f32 to vector<8x128xf32>
    %28 = arith.addf %27, %26 : vector<8x128xf32>
    %29 = arith.divf %27, %28 : vector<8x128xf32>
    %30 = vector.extract_strided_slice %12 {offsets = [0, 256], sizes = [8, 128], strides = [1, 1]} : vector<8x384xf32> to vector<8x128xf32>
    %31 = vector.extract_strided_slice %13 {offsets = [0, 256], sizes = [8, 128], strides = [1, 1]} : vector<8x384xf32> to vector<8x128xf32>
    %32 = arith.addf %31, %7 : vector<8x128xf32>
    %33 = arith.mulf %21, %32 : vector<8x128xf32>
    %34 = arith.addf %30, %33 : vector<8x128xf32>
    %35 = math.tanh %34 : vector<8x128xf32>
    %cst_13 = arith.constant 1.000000e+00 : f32
    %36 = vector.broadcast %cst_13 : f32 to vector<8x128xf32>
    %37 = arith.subf %36, %29 : vector<8x128xf32>
    %38 = arith.mulf %37, %35 : vector<8x128xf32>
    %39 = arith.mulf %29, %11 : vector<8x128xf32>
    %40 = arith.addf %38, %39 : vector<8x128xf32>
    %41 = vector.extract_strided_slice %10 {offsets = [8, 0], sizes = [8, 384], strides = [1, 1]} : vector<64x384xf32> to vector<8x384xf32>
    %cst_14 = arith.constant dense<0.000000e+00> : vector<8x384xf32>
    %42 = tpu.matmul %40, %1, %cst_14 {dimension_numbers = #tpu.dot_dimension_numbers<[1], [0], [0], [1], [0, 0, 1, 1], [], []>} : vector<8x128xf32>, vector<128x384xf32>, vector<8x384xf32> -> vector<8x384xf32>
    %43 = vector.extract_strided_slice %41 {offsets = [0, 0], sizes = [8, 128], strides = [1, 1]} : vector<8x384xf32> to vector<8x128xf32>
    %44 = vector.extract_strided_slice %42 {offsets = [0, 0], sizes = [8, 128], strides = [1, 1]} : vector<8x384xf32> to vector<8x128xf32>
    %45 = arith.addf %43, %44 : vector<8x128xf32>
    %46 = arith.negf %45 : vector<8x128xf32>
    %47 = math.exp %46 : vector<8x128xf32>
    %cst_15 = arith.constant 1.000000e+00 : f32
    %48 = vector.broadcast %cst_15 : f32 to vector<8x128xf32>
    %49 = arith.addf %48, %47 : vector<8x128xf32>
    %50 = arith.divf %48, %49 : vector<8x128xf32>
    %51 = vector.extract_strided_slice %41 {offsets = [0, 128], sizes = [8, 128], strides = [1, 1]} : vector<8x384xf32> to vector<8x128xf32>
    %52 = vector.extract_strided_slice %42 {offsets = [0, 128], sizes = [8, 128], strides = [1, 1]} : vector<8x384xf32> to vector<8x128xf32>
    %53 = arith.addf %51, %52 : vector<8x128xf32>
    %54 = arith.negf %53 : vector<8x128xf32>
    %55 = math.exp %54 : vector<8x128xf32>
    %cst_16 = arith.constant 1.000000e+00 : f32
    %56 = vector.broadcast %cst_16 : f32 to vector<8x128xf32>
    %57 = arith.addf %56, %55 : vector<8x128xf32>
    %58 = arith.divf %56, %57 : vector<8x128xf32>
    %59 = vector.extract_strided_slice %41 {offsets = [0, 256], sizes = [8, 128], strides = [1, 1]} : vector<8x384xf32> to vector<8x128xf32>
    %60 = vector.extract_strided_slice %42 {offsets = [0, 256], sizes = [8, 128], strides = [1, 1]} : vector<8x384xf32> to vector<8x128xf32>
    %61 = arith.addf %60, %7 : vector<8x128xf32>
    %62 = arith.mulf %50, %61 : vector<8x128xf32>
    %63 = arith.addf %59, %62 : vector<8x128xf32>
    %64 = math.tanh %63 : vector<8x128xf32>
    %cst_17 = arith.constant 1.000000e+00 : f32
    %65 = vector.broadcast %cst_17 : f32 to vector<8x128xf32>
    %66 = arith.subf %65, %58 : vector<8x128xf32>
    %67 = arith.mulf %66, %64 : vector<8x128xf32>
    %68 = arith.mulf %58, %40 : vector<8x128xf32>
    %69 = arith.addf %67, %68 : vector<8x128xf32>
    %70 = vector.extract_strided_slice %10 {offsets = [16, 0], sizes = [8, 384], strides = [1, 1]} : vector<64x384xf32> to vector<8x384xf32>
    %cst_18 = arith.constant dense<0.000000e+00> : vector<8x384xf32>
    %71 = tpu.matmul %69, %1, %cst_18 {dimension_numbers = #tpu.dot_dimension_numbers<[1], [0], [0], [1], [0, 0, 1, 1], [], []>} : vector<8x128xf32>, vector<128x384xf32>, vector<8x384xf32> -> vector<8x384xf32>
    %72 = vector.extract_strided_slice %70 {offsets = [0, 0], sizes = [8, 128], strides = [1, 1]} : vector<8x384xf32> to vector<8x128xf32>
    %73 = vector.extract_strided_slice %71 {offsets = [0, 0], sizes = [8, 128], strides = [1, 1]} : vector<8x384xf32> to vector<8x128xf32>
    %74 = arith.addf %72, %73 : vector<8x128xf32>
    %75 = arith.negf %74 : vector<8x128xf32>
    %76 = math.exp %75 : vector<8x128xf32>
    %cst_19 = arith.constant 1.000000e+00 : f32
    %77 = vector.broadcast %cst_19 : f32 to vector<8x128xf32>
    %78 = arith.addf %77, %76 : vector<8x128xf32>
    %79 = arith.divf %77, %78 : vector<8x128xf32>
    %80 = vector.extract_strided_slice %70 {offsets = [0, 128], sizes = [8, 128], strides = [1, 1]} : vector<8x384xf32> to vector<8x128xf32>
    %81 = vector.extract_strided_slice %71 {offsets = [0, 128], sizes = [8, 128], strides = [1, 1]} : vector<8x384xf32> to vector<8x128xf32>
    %82 = arith.addf %80, %81 : vector<8x128xf32>
    %83 = arith.negf %82 : vector<8x128xf32>
    %84 = math.exp %83 : vector<8x128xf32>
    %cst_20 = arith.constant 1.000000e+00 : f32
    %85 = vector.broadcast %cst_20 : f32 to vector<8x128xf32>
    %86 = arith.addf %85, %84 : vector<8x128xf32>
    %87 = arith.divf %85, %86 : vector<8x128xf32>
    %88 = vector.extract_strided_slice %70 {offsets = [0, 256], sizes = [8, 128], strides = [1, 1]} : vector<8x384xf32> to vector<8x128xf32>
    %89 = vector.extract_strided_slice %71 {offsets = [0, 256], sizes = [8, 128], strides = [1, 1]} : vector<8x384xf32> to vector<8x128xf32>
    %90 = arith.addf %89, %7 : vector<8x128xf32>
    %91 = arith.mulf %79, %90 : vector<8x128xf32>
    %92 = arith.addf %88, %91 : vector<8x128xf32>
    %93 = math.tanh %92 : vector<8x128xf32>
    %cst_21 = arith.constant 1.000000e+00 : f32
    %94 = vector.broadcast %cst_21 : f32 to vector<8x128xf32>
    %95 = arith.subf %94, %87 : vector<8x128xf32>
    %96 = arith.mulf %95, %93 : vector<8x128xf32>
    %97 = arith.mulf %87, %69 : vector<8x128xf32>
    %98 = arith.addf %96, %97 : vector<8x128xf32>
    %99 = vector.extract_strided_slice %10 {offsets = [24, 0], sizes = [8, 384], strides = [1, 1]} : vector<64x384xf32> to vector<8x384xf32>
    %cst_22 = arith.constant dense<0.000000e+00> : vector<8x384xf32>
    %100 = tpu.matmul %98, %1, %cst_22 {dimension_numbers = #tpu.dot_dimension_numbers<[1], [0], [0], [1], [0, 0, 1, 1], [], []>} : vector<8x128xf32>, vector<128x384xf32>, vector<8x384xf32> -> vector<8x384xf32>
    %101 = vector.extract_strided_slice %99 {offsets = [0, 0], sizes = [8, 128], strides = [1, 1]} : vector<8x384xf32> to vector<8x128xf32>
    %102 = vector.extract_strided_slice %100 {offsets = [0, 0], sizes = [8, 128], strides = [1, 1]} : vector<8x384xf32> to vector<8x128xf32>
    %103 = arith.addf %101, %102 : vector<8x128xf32>
    %104 = arith.negf %103 : vector<8x128xf32>
    %105 = math.exp %104 : vector<8x128xf32>
    %cst_23 = arith.constant 1.000000e+00 : f32
    %106 = vector.broadcast %cst_23 : f32 to vector<8x128xf32>
    %107 = arith.addf %106, %105 : vector<8x128xf32>
    %108 = arith.divf %106, %107 : vector<8x128xf32>
    %109 = vector.extract_strided_slice %99 {offsets = [0, 128], sizes = [8, 128], strides = [1, 1]} : vector<8x384xf32> to vector<8x128xf32>
    %110 = vector.extract_strided_slice %100 {offsets = [0, 128], sizes = [8, 128], strides = [1, 1]} : vector<8x384xf32> to vector<8x128xf32>
    %111 = arith.addf %109, %110 : vector<8x128xf32>
    %112 = arith.negf %111 : vector<8x128xf32>
    %113 = math.exp %112 : vector<8x128xf32>
    %cst_24 = arith.constant 1.000000e+00 : f32
    %114 = vector.broadcast %cst_24 : f32 to vector<8x128xf32>
    %115 = arith.addf %114, %113 : vector<8x128xf32>
    %116 = arith.divf %114, %115 : vector<8x128xf32>
    %117 = vector.extract_strided_slice %99 {offsets = [0, 256], sizes = [8, 128], strides = [1, 1]} : vector<8x384xf32> to vector<8x128xf32>
    %118 = vector.extract_strided_slice %100 {offsets = [0, 256], sizes = [8, 128], strides = [1, 1]} : vector<8x384xf32> to vector<8x128xf32>
    %119 = arith.addf %118, %7 : vector<8x128xf32>
    %120 = arith.mulf %108, %119 : vector<8x128xf32>
    %121 = arith.addf %117, %120 : vector<8x128xf32>
    %122 = math.tanh %121 : vector<8x128xf32>
    %cst_25 = arith.constant 1.000000e+00 : f32
    %123 = vector.broadcast %cst_25 : f32 to vector<8x128xf32>
    %124 = arith.subf %123, %116 : vector<8x128xf32>
    %125 = arith.mulf %124, %122 : vector<8x128xf32>
    %126 = arith.mulf %116, %98 : vector<8x128xf32>
    %127 = arith.addf %125, %126 : vector<8x128xf32>
    %128 = vector.extract_strided_slice %10 {offsets = [32, 0], sizes = [8, 384], strides = [1, 1]} : vector<64x384xf32> to vector<8x384xf32>
    %cst_26 = arith.constant dense<0.000000e+00> : vector<8x384xf32>
    %129 = tpu.matmul %127, %1, %cst_26 {dimension_numbers = #tpu.dot_dimension_numbers<[1], [0], [0], [1], [0, 0, 1, 1], [], []>} : vector<8x128xf32>, vector<128x384xf32>, vector<8x384xf32> -> vector<8x384xf32>
    %130 = vector.extract_strided_slice %128 {offsets = [0, 0], sizes = [8, 128], strides = [1, 1]} : vector<8x384xf32> to vector<8x128xf32>
    %131 = vector.extract_strided_slice %129 {offsets = [0, 0], sizes = [8, 128], strides = [1, 1]} : vector<8x384xf32> to vector<8x128xf32>
    %132 = arith.addf %130, %131 : vector<8x128xf32>
    %133 = arith.negf %132 : vector<8x128xf32>
    %134 = math.exp %133 : vector<8x128xf32>
    %cst_27 = arith.constant 1.000000e+00 : f32
    %135 = vector.broadcast %cst_27 : f32 to vector<8x128xf32>
    %136 = arith.addf %135, %134 : vector<8x128xf32>
    %137 = arith.divf %135, %136 : vector<8x128xf32>
    %138 = vector.extract_strided_slice %128 {offsets = [0, 128], sizes = [8, 128], strides = [1, 1]} : vector<8x384xf32> to vector<8x128xf32>
    %139 = vector.extract_strided_slice %129 {offsets = [0, 128], sizes = [8, 128], strides = [1, 1]} : vector<8x384xf32> to vector<8x128xf32>
    %140 = arith.addf %138, %139 : vector<8x128xf32>
    %141 = arith.negf %140 : vector<8x128xf32>
    %142 = math.exp %141 : vector<8x128xf32>
    %cst_28 = arith.constant 1.000000e+00 : f32
    %143 = vector.broadcast %cst_28 : f32 to vector<8x128xf32>
    %144 = arith.addf %143, %142 : vector<8x128xf32>
    %145 = arith.divf %143, %144 : vector<8x128xf32>
    %146 = vector.extract_strided_slice %128 {offsets = [0, 256], sizes = [8, 128], strides = [1, 1]} : vector<8x384xf32> to vector<8x128xf32>
    %147 = vector.extract_strided_slice %129 {offsets = [0, 256], sizes = [8, 128], strides = [1, 1]} : vector<8x384xf32> to vector<8x128xf32>
    %148 = arith.addf %147, %7 : vector<8x128xf32>
    %149 = arith.mulf %137, %148 : vector<8x128xf32>
    %150 = arith.addf %146, %149 : vector<8x128xf32>
    %151 = math.tanh %150 : vector<8x128xf32>
    %cst_29 = arith.constant 1.000000e+00 : f32
    %152 = vector.broadcast %cst_29 : f32 to vector<8x128xf32>
    %153 = arith.subf %152, %145 : vector<8x128xf32>
    %154 = arith.mulf %153, %151 : vector<8x128xf32>
    %155 = arith.mulf %145, %127 : vector<8x128xf32>
    %156 = arith.addf %154, %155 : vector<8x128xf32>
    %157 = vector.extract_strided_slice %10 {offsets = [40, 0], sizes = [8, 384], strides = [1, 1]} : vector<64x384xf32> to vector<8x384xf32>
    %cst_30 = arith.constant dense<0.000000e+00> : vector<8x384xf32>
    %158 = tpu.matmul %156, %1, %cst_30 {dimension_numbers = #tpu.dot_dimension_numbers<[1], [0], [0], [1], [0, 0, 1, 1], [], []>} : vector<8x128xf32>, vector<128x384xf32>, vector<8x384xf32> -> vector<8x384xf32>
    %159 = vector.extract_strided_slice %157 {offsets = [0, 0], sizes = [8, 128], strides = [1, 1]} : vector<8x384xf32> to vector<8x128xf32>
    %160 = vector.extract_strided_slice %158 {offsets = [0, 0], sizes = [8, 128], strides = [1, 1]} : vector<8x384xf32> to vector<8x128xf32>
    %161 = arith.addf %159, %160 : vector<8x128xf32>
    %162 = arith.negf %161 : vector<8x128xf32>
    %163 = math.exp %162 : vector<8x128xf32>
    %cst_31 = arith.constant 1.000000e+00 : f32
    %164 = vector.broadcast %cst_31 : f32 to vector<8x128xf32>
    %165 = arith.addf %164, %163 : vector<8x128xf32>
    %166 = arith.divf %164, %165 : vector<8x128xf32>
    %167 = vector.extract_strided_slice %157 {offsets = [0, 128], sizes = [8, 128], strides = [1, 1]} : vector<8x384xf32> to vector<8x128xf32>
    %168 = vector.extract_strided_slice %158 {offsets = [0, 128], sizes = [8, 128], strides = [1, 1]} : vector<8x384xf32> to vector<8x128xf32>
    %169 = arith.addf %167, %168 : vector<8x128xf32>
    %170 = arith.negf %169 : vector<8x128xf32>
    %171 = math.exp %170 : vector<8x128xf32>
    %cst_32 = arith.constant 1.000000e+00 : f32
    %172 = vector.broadcast %cst_32 : f32 to vector<8x128xf32>
    %173 = arith.addf %172, %171 : vector<8x128xf32>
    %174 = arith.divf %172, %173 : vector<8x128xf32>
    %175 = vector.extract_strided_slice %157 {offsets = [0, 256], sizes = [8, 128], strides = [1, 1]} : vector<8x384xf32> to vector<8x128xf32>
    %176 = vector.extract_strided_slice %158 {offsets = [0, 256], sizes = [8, 128], strides = [1, 1]} : vector<8x384xf32> to vector<8x128xf32>
    %177 = arith.addf %176, %7 : vector<8x128xf32>
    %178 = arith.mulf %166, %177 : vector<8x128xf32>
    %179 = arith.addf %175, %178 : vector<8x128xf32>
    %180 = math.tanh %179 : vector<8x128xf32>
    %cst_33 = arith.constant 1.000000e+00 : f32
    %181 = vector.broadcast %cst_33 : f32 to vector<8x128xf32>
    %182 = arith.subf %181, %174 : vector<8x128xf32>
    %183 = arith.mulf %182, %180 : vector<8x128xf32>
    %184 = arith.mulf %174, %156 : vector<8x128xf32>
    %185 = arith.addf %183, %184 : vector<8x128xf32>
    %186 = vector.extract_strided_slice %10 {offsets = [48, 0], sizes = [8, 384], strides = [1, 1]} : vector<64x384xf32> to vector<8x384xf32>
    %cst_34 = arith.constant dense<0.000000e+00> : vector<8x384xf32>
    %187 = tpu.matmul %185, %1, %cst_34 {dimension_numbers = #tpu.dot_dimension_numbers<[1], [0], [0], [1], [0, 0, 1, 1], [], []>} : vector<8x128xf32>, vector<128x384xf32>, vector<8x384xf32> -> vector<8x384xf32>
    %188 = vector.extract_strided_slice %186 {offsets = [0, 0], sizes = [8, 128], strides = [1, 1]} : vector<8x384xf32> to vector<8x128xf32>
    %189 = vector.extract_strided_slice %187 {offsets = [0, 0], sizes = [8, 128], strides = [1, 1]} : vector<8x384xf32> to vector<8x128xf32>
    %190 = arith.addf %188, %189 : vector<8x128xf32>
    %191 = arith.negf %190 : vector<8x128xf32>
    %192 = math.exp %191 : vector<8x128xf32>
    %cst_35 = arith.constant 1.000000e+00 : f32
    %193 = vector.broadcast %cst_35 : f32 to vector<8x128xf32>
    %194 = arith.addf %193, %192 : vector<8x128xf32>
    %195 = arith.divf %193, %194 : vector<8x128xf32>
    %196 = vector.extract_strided_slice %186 {offsets = [0, 128], sizes = [8, 128], strides = [1, 1]} : vector<8x384xf32> to vector<8x128xf32>
    %197 = vector.extract_strided_slice %187 {offsets = [0, 128], sizes = [8, 128], strides = [1, 1]} : vector<8x384xf32> to vector<8x128xf32>
    %198 = arith.addf %196, %197 : vector<8x128xf32>
    %199 = arith.negf %198 : vector<8x128xf32>
    %200 = math.exp %199 : vector<8x128xf32>
    %cst_36 = arith.constant 1.000000e+00 : f32
    %201 = vector.broadcast %cst_36 : f32 to vector<8x128xf32>
    %202 = arith.addf %201, %200 : vector<8x128xf32>
    %203 = arith.divf %201, %202 : vector<8x128xf32>
    %204 = vector.extract_strided_slice %186 {offsets = [0, 256], sizes = [8, 128], strides = [1, 1]} : vector<8x384xf32> to vector<8x128xf32>
    %205 = vector.extract_strided_slice %187 {offsets = [0, 256], sizes = [8, 128], strides = [1, 1]} : vector<8x384xf32> to vector<8x128xf32>
    %206 = arith.addf %205, %7 : vector<8x128xf32>
    %207 = arith.mulf %195, %206 : vector<8x128xf32>
    %208 = arith.addf %204, %207 : vector<8x128xf32>
    %209 = math.tanh %208 : vector<8x128xf32>
    %cst_37 = arith.constant 1.000000e+00 : f32
    %210 = vector.broadcast %cst_37 : f32 to vector<8x128xf32>
    %211 = arith.subf %210, %203 : vector<8x128xf32>
    %212 = arith.mulf %211, %209 : vector<8x128xf32>
    %213 = arith.mulf %203, %185 : vector<8x128xf32>
    %214 = arith.addf %212, %213 : vector<8x128xf32>
    %215 = vector.extract_strided_slice %10 {offsets = [56, 0], sizes = [8, 384], strides = [1, 1]} : vector<64x384xf32> to vector<8x384xf32>
    %cst_38 = arith.constant dense<0.000000e+00> : vector<8x384xf32>
    %216 = tpu.matmul %214, %1, %cst_38 {dimension_numbers = #tpu.dot_dimension_numbers<[1], [0], [0], [1], [0, 0, 1, 1], [], []>} : vector<8x128xf32>, vector<128x384xf32>, vector<8x384xf32> -> vector<8x384xf32>
    %217 = vector.extract_strided_slice %215 {offsets = [0, 0], sizes = [8, 128], strides = [1, 1]} : vector<8x384xf32> to vector<8x128xf32>
    %218 = vector.extract_strided_slice %216 {offsets = [0, 0], sizes = [8, 128], strides = [1, 1]} : vector<8x384xf32> to vector<8x128xf32>
    %219 = arith.addf %217, %218 : vector<8x128xf32>
    %220 = arith.negf %219 : vector<8x128xf32>
    %221 = math.exp %220 : vector<8x128xf32>
    %cst_39 = arith.constant 1.000000e+00 : f32
    %222 = vector.broadcast %cst_39 : f32 to vector<8x128xf32>
    %223 = arith.addf %222, %221 : vector<8x128xf32>
    %224 = arith.divf %222, %223 : vector<8x128xf32>
    %225 = vector.extract_strided_slice %215 {offsets = [0, 128], sizes = [8, 128], strides = [1, 1]} : vector<8x384xf32> to vector<8x128xf32>
    %226 = vector.extract_strided_slice %216 {offsets = [0, 128], sizes = [8, 128], strides = [1, 1]} : vector<8x384xf32> to vector<8x128xf32>
    %227 = arith.addf %225, %226 : vector<8x128xf32>
    %228 = arith.negf %227 : vector<8x128xf32>
    %229 = math.exp %228 : vector<8x128xf32>
    %cst_40 = arith.constant 1.000000e+00 : f32
    %230 = vector.broadcast %cst_40 : f32 to vector<8x128xf32>
    %231 = arith.addf %230, %229 : vector<8x128xf32>
    %232 = arith.divf %230, %231 : vector<8x128xf32>
    %233 = vector.extract_strided_slice %215 {offsets = [0, 256], sizes = [8, 128], strides = [1, 1]} : vector<8x384xf32> to vector<8x128xf32>
    %234 = vector.extract_strided_slice %216 {offsets = [0, 256], sizes = [8, 128], strides = [1, 1]} : vector<8x384xf32> to vector<8x128xf32>
    %235 = arith.addf %234, %7 : vector<8x128xf32>
    %236 = arith.mulf %224, %235 : vector<8x128xf32>
    %237 = arith.addf %233, %236 : vector<8x128xf32>
    %238 = math.tanh %237 : vector<8x128xf32>
    %cst_41 = arith.constant 1.000000e+00 : f32
    %239 = vector.broadcast %cst_41 : f32 to vector<8x128xf32>
    %240 = arith.subf %239, %232 : vector<8x128xf32>
    %241 = arith.mulf %240, %238 : vector<8x128xf32>
    %242 = arith.mulf %232, %214 : vector<8x128xf32>
    %243 = arith.addf %241, %242 : vector<8x128xf32>
    %244 = vector.extract_strided_slice %243 {offsets = [0, 0], sizes = [2, 32], strides = [1, 1]} : vector<8x128xf32> to vector<2x32xf32>
    %c0_42 = arith.constant 0 : index
    %c0_43 = arith.constant 0 : index
    %245 = vector.load %arg5[%c0_42, %c0_43] : memref<2x32xf32, #tpu.memory_space<vmem>>, vector<2x32xf32>
    tpu.vector_store %arg5[%c0_42, %c0_43], %244 {strides = array<i32>} : memref<2x32xf32, #tpu.memory_space<vmem>>, vector<2x32xf32>,
    return
  }
}

</mosaic_0001>

<llo_original>
// kernel: question_embedding_forward.1
$region0: #{question_embedding_forward.1}
  #allocation0 [shape = 'u32[]', space=smem, size = 0x4, offset = 0x4, fixed_abs, tag = 'smem constant byte address 0x4 - core index']
  #allocation1 [shape = 'u32[144,128]{1,0:T(1,128)}', space=vmem, size = 0x12000, scoped, tag = 'internal scratch']
  %s0 = inlined_call_operand.vmem [shape: f32[64,32], index: 0, kind: input, shape index: {}]
  %s1 = inlined_call_operand.vmem [shape: f32[32,384], index: 1, kind: input, shape index: {}]
  %s2 = inlined_call_operand.vmem [shape: f32[128,384], index: 2, kind: input, shape index: {}]
  %s3 = inlined_call_operand.vmem [shape: f32[1,384], index: 3, kind: input, shape index: {}]
  %s4 = inlined_call_operand.vmem [shape: f32[1,128], index: 4, kind: input, shape index: {}]
  %s5 = inlined_call_operand.hbm [shape: f32[2,32], index: 5, kind: output, shape index: {}]
  %s6 = sld [smem:[#allocation0]]
  $region30: #{question_embedding_forward.1} parent=0
    _
  %s8 = ssub.s32 1, %s6
  %s9 = scalar_select 0, %s8, %s6
  $region1: #{question_embedding_forward.1} parent=0
    #allocation2 [shape = 'u8[1024]{0}', space=vmem, size = 0x400, scoped, tag = 'output window, operand 0, single buffered']
    #allocation3 [shape = 's32[1]{0}', space=sflag, size = 0x4, scoped, tag = 'scoped memory for question_embedding_forward.1']
    %10 = vsyncpa [#allocation3], 0
    // Predicated region
    $region2: #{question_embedding_forward.1} parent=1 // pred_check
      _
    $region3: #{question_embedding_forward.1} parent=1 // pred_check_branch
      %12 = sbr.rel (0) target = $region5
    $region4: #{question_embedding_forward.1} parent=1 // pred_region
      _
    $region5: #{question_embedding_forward.1} parent=1 // pred_fallthru
      _
    // Predicated region
    $region6: #{question_embedding_forward.1} parent=1 // pred_check
      _
    $region7: #{question_embedding_forward.1} parent=1 // pred_check_branch
      %14 = sbr.rel (0) target = $region9
    $region8: #{question_embedding_forward.1} parent=1 // pred_region
      _
    $region9: #{question_embedding_forward.1} parent=1 // pred_fallthru
      _
    // Predicated region
    $region10: #{question_embedding_forward.1} parent=1 // pred_check
      _
    $region11: #{question_embedding_forward.1} parent=1 // pred_check_branch
      %16 = sbr.rel (0) target = $region13
    $region12: #{question_embedding_forward.1} parent=1 // pred_region
      _
    $region13: #{question_embedding_forward.1} parent=1 // pred_fallthru
      _
    // Predicated region
    $region14: #{question_embedding_forward.1} parent=1 // pred_check
      _
    $region15: #{question_embedding_forward.1} parent=1 // pred_check_branch
      %18 = sbr.rel (0) target = $region17
    $region16: #{question_embedding_forward.1} parent=1 // pred_region
      _
    $region17: #{question_embedding_forward.1} parent=1 // pred_fallthru
      _
    // Predicated region
    $region18: #{question_embedding_forward.1} parent=1 // pred_check
      _
    $region19: #{question_embedding_forward.1} parent=1 // pred_check_branch
      %20 = sbr.rel (0) target = $region21
    $region20: #{question_embedding_forward.1} parent=1 // pred_region
      _
    $region21: #{question_embedding_forward.1} parent=1 // pred_fallthru
      _
    %v21 = vld [vmem:[%s1] sm:$0xff]
    %v22 = vld [vmem:[%s1 + $0x8] sm:$0xff]
    %v23 = vld [vmem:[%s1 + $0x10] sm:$0xff]
    %v24 = vld [vmem:[%s1 + $0x18] sm:$0xff]
    %v25 = vld [vmem:[%s1 + $0x20] sm:$0xff]
    %v26 = vld [vmem:[%s1 + $0x28] sm:$0xff]
    %v27 = vld [vmem:[%s1 + $0x30] sm:$0xff]
    %v28 = vld [vmem:[%s1 + $0x38] sm:$0xff]
    %v29 = vld [vmem:[%s1 + $0x40] sm:$0xff]
    %v30 = vld [vmem:[%s1 + $0x48] sm:$0xff]
    %v31 = vld [vmem:[%s1 + $0x50] sm:$0xff]
    %v32 = vld [vmem:[%s1 + $0x58] sm:$0xff]
    %v33 = vld [vmem:[%s2] sm:$0xff]
    %v34 = vld [vmem:[%s2 + $0x8] sm:$0xff]
    %v35 = vld [vmem:[%s2 + $0x10] sm:$0xff]
    %v36 = vld [vmem:[%s2 + $0x18] sm:$0xff]
    %v37 = vld [vmem:[%s2 + $0x20] sm:$0xff]
    %v38 = vld [vmem:[%s2 + $0x28] sm:$0xff]
    %v39 = vld [vmem:[%s2 + $0x30] sm:$0xff]
    %v40 = vld [vmem:[%s2 + $0x38] sm:$0xff]
    %v41 = vld [vmem:[%s2 + $0x40] sm:$0xff]
    %v42 = vld [vmem:[%s2 + $0x48] sm:$0xff]
    %v43 = vld [vmem:[%s2 + $0x50] sm:$0xff]
    %v44 = vld [vmem:[%s2 + $0x58] sm:$0xff]
    %v45 = vld [vmem:[%s2 + $0x60] sm:$0xff]
    %v46 = vld [vmem:[%s2 + $0x68] sm:$0xff]
    %v47 = vld [vmem:[%s2 + $0x70] sm:$0xff]
    %v48 = vld [vmem:[%s2 + $0x78] sm:$0xff]
    %v49 = vld [vmem:[%s2 + $0x80] sm:$0xff]
    %v50 = vld [vmem:[%s2 + $0x88] sm:$0xff]
    %v51 = vld [vmem:[%s2 + $0x90] sm:$0xff]
    %v52 = vld [vmem:[%s2 + $0x98] sm:$0xff]
    %v53 = vld [vmem:[%s2 + $0xa0] sm:$0xff]
    %v54 = vld [vmem:[%s2 + $0xa8] sm:$0xff]
    %v55 = vld [vmem:[%s2 + $0xb0] sm:$0xff]
    %v56 = vld [vmem:[%s2 + $0xb8] sm:$0xff]
    %v57 = vld [vmem:[%s2 + $0xc0] sm:$0xff]
    %v58 = vld [vmem:[%s2 + $0xc8] sm:$0xff]
    %v59 = vld [vmem:[%s2 + $0xd0] sm:$0xff]
    %v60 = vld [vmem:[%s2 + $0xd8] sm:$0xff]
    %v61 = vld [vmem:[%s2 + $0xe0] sm:$0xff]
    %v62 = vld [vmem:[%s2 + $0xe8] sm:$0xff]
    %v63 = vld [vmem:[%s2 + $0xf0] sm:$0xff]
    %v64 = vld [vmem:[%s2 + $0xf8] sm:$0xff]
    %v65 = vld [vmem:[%s2 + $0x100] sm:$0xff]
    %v66 = vld [vmem:[%s2 + $0x108] sm:$0xff]
    %v67 = vld [vmem:[%s2 + $0x110] sm:$0xff]
    %v68 = vld [vmem:[%s2 + $0x118] sm:$0xff]
    %v69 = vld [vmem:[%s2 + $0x120] sm:$0xff]
    %v70 = vld [vmem:[%s2 + $0x128] sm:$0xff]
    %v71 = vld [vmem:[%s2 + $0x130] sm:$0xff]
    %v72 = vld [vmem:[%s2 + $0x138] sm:$0xff]
    %v73 = vld [vmem:[%s2 + $0x140] sm:$0xff]
    %v74 = vld [vmem:[%s2 + $0x148] sm:$0xff]
    %v75 = vld [vmem:[%s2 + $0x150] sm:$0xff]
    %v76 = vld [vmem:[%s2 + $0x158] sm:$0xff]
    %v77 = vld [vmem:[%s2 + $0x160] sm:$0xff]
    %v78 = vld [vmem:[%s2 + $0x168] sm:$0xff]
    %v79 = vld [vmem:[%s2 + $0x170] sm:$0xff]
    %v80 = vld [vmem:[%s2 + $0x178] sm:$0xff]
    %v81 = vld [vmem:[%s3] sm:$0x7]
    %v83 = vlaneseq
    %v84 = vshrl.u32 %v83, 7
    %v85 = vsub.s32 0, %v84
    %v86 = vrot.slane %v81, %v85
    %v87 = vlaneseq
    %v88 = vshrl.u32 %v87, 7
    %v89 = vsub.s32 1, %v88
    %v90 = vrot.slane %v81, %v89
    %v91 = vlaneseq
    %v92 = vshrl.u32 %v91, 7
    %v93 = vsub.s32 2, %v92
    %v94 = vrot.slane %v81, %v93
    %v98 = vld [vmem:[%s4] sm:$0x1]
    %v100 = vlaneseq
    %v101 = vshrl.u32 %v100, 7
    %v102 = vsub.s32 0, %v101
    %v103 = vrot.slane %v98, %v102
    %v105 = vld [vmem:[%s0] sm:$0xff]
    %v106 = vld [vmem:[%s0 + $0x8] sm:$0xff]
    %v107 = vld [vmem:[%s0 + $0x10] sm:$0xff]
    %v108 = vld [vmem:[%s0 + $0x18] sm:$0xff]
    %v109 = vld [vmem:[%s0 + $0x20] sm:$0xff]
    %v110 = vld [vmem:[%s0 + $0x28] sm:$0xff]
    %v111 = vld [vmem:[%s0 + $0x30] sm:$0xff]
    %v112 = vld [vmem:[%s0 + $0x38] sm:$0xff]
    %vm113 = vcmask 261120
    %v115 = vsel %vm113, %v105, 0
    %v118 = vsel %vm113, %v106, 0
    %v121 = vsel %vm113, %v107, 0
    %v124 = vsel %vm113, %v108, 0
    %v127 = vsel %vm113, %v109, 0
    %v130 = vsel %vm113, %v110, 0
    %v133 = vsel %vm113, %v111, 0
    %v136 = vsel %vm113, %v112, 0
    %138 = vmatprep.subr.mxu0 0.0
    %139 = vmatpush1.msra.mxu0 0.0
    %140 = vmatprep.subr.mxu0 0.0
    %141 = vmatpush1.msra.mxu0 0.0
    %142 = vmatprep.subr.mxu0 0.0
    %143 = vmatpush1.msra.mxu0 0.0
    %144 = vmatprep.subr.mxu0 0.0
    %145 = vmatpush1.msra.mxu0 0.0
    %146 = vmatprep.subr.mxu0 0.0
    %147 = vmatpush1.msra.mxu0 0.0
    %148 = vmatprep.subr.mxu0 0.0
    %149 = vmatpush1.msra.mxu0 0.0
    %150 = vmatprep.subr.mxu0 0.0
    %151 = vmatpush1.msra.mxu0 0.0
    %152 = vmatprep.subr.mxu0 0.0
    %153 = vmatpush1.msra.mxu0 0.0
    %154 = vmatprep.subr.mxu0 0.0
    %155 = vmatpush1.msra.mxu0 0.0
    %156 = vmatprep.subr.mxu0 0.0
    %157 = vmatpush1.msra.mxu0 0.0
    %158 = vmatprep.subr.mxu0 0.0
    %159 = vmatpush1.msra.mxu0 0.0
    %160 = vmatprep.subr.mxu0 0.0
    %161 = vmatpush1.msra.mxu0 0.0
    %162 = vmatprep.subr.mxu0 %v31
    %163 = vmatpush1.msra.mxu0 %v30
    %164 = vmatprep.subr.mxu0 %v28
    %165 = vmatpush1.msra.mxu0 %v27
    %166 = vmatprep.subr.mxu0 %v25
    %167 = vmatpush1.msra.mxu0 %v24
    %168 = vmatprep.subr.mxu0 %v22
    %169 = vmatpush1.msra.mxu0 %v21
    %170 = vmatprep.subr.mxu0 0.0
    %171 = vmatpush2.msra.mxu0 0.0
    %172 = vmatprep.subr.mxu0 0.0
    %173 = vmatpush2.msra.mxu0 0.0
    %174 = vmatprep.subr.mxu0 0.0
    %175 = vmatpush2.msra.mxu0 0.0
    %176 = vmatprep.subr.mxu0 0.0
    %177 = vmatpush2.msra.mxu0 0.0
    %178 = vmatprep.subr.mxu0 0.0
    %179 = vmatpush2.msra.mxu0 0.0
    %180 = vmatprep.subr.mxu0 0.0
    %181 = vmatpush2.msra.mxu0 0.0
    %182 = vmatprep.subr.mxu0 0.0
    %183 = vmatpush2.msra.mxu0 0.0
    %184 = vmatprep.subr.mxu0 0.0
    %185 = vmatpush2.msra.mxu0 0.0
    %186 = vmatprep.subr.mxu0 0.0
    %187 = vmatpush2.msra.mxu0 0.0
    %188 = vmatprep.subr.mxu0 0.0
    %189 = vmatpush2.msra.mxu0 0.0
    %190 = vmatprep.subr.mxu0 0.0
    %191 = vmatpush2.msra.mxu0 0.0
    %192 = vmatprep.subr.mxu0 0.0
    %193 = vmatpush2.msra.mxu0 0.0
    %194 = vmatprep.subr.mxu0 0.0
    %195 = vmatpush2.msra.mxu0 0.0
    %196 = vmatprep.subr.mxu0 0.0
    %197 = vmatpush2.msra.mxu0 0.0
    %198 = vmatprep.subr.mxu0 0.0
    %199 = vmatpush2.msra.mxu0 0.0
    %200 = vmatprep.subr.mxu0 0.0
    %201 = vmatpush2.msra.mxu0 0.0
    %202 = vmatprep.mubr.f32.mxu0 0.0
    %203 = vmatmul.mubr.f32.gmra.mxu0 %v115
    %v204 = vpop.f32.mrf.mxu0
    %v205 = vadd.f32 %v86, %v204
    %v206 = vpop.f32.mrf.mxu0
    %v207 = vadd.f32 %v90, %v206
    %208 = vmatprep.mubr.f32.mxu0 0.0
    %209 = vmatmul.mubr.f32.gmra.mxu0 %v118
    %v210 = vpop.f32.mrf.mxu0
    %v211 = vadd.f32 %v86, %v210
    %v212 = vpop.f32.mrf.mxu0
    %v213 = vadd.f32 %v90, %v212
    %214 = vmatprep.mubr.f32.mxu0 0.0
    %215 = vmatmul.mubr.f32.gmra.mxu0 %v121
    %v216 = vpop.f32.mrf.mxu0
    %v217 = vadd.f32 %v86, %v216
    %v218 = vpop.f32.mrf.mxu0
    %v219 = vadd.f32 %v90, %v218
    %220 = vmatprep.mubr.f32.mxu0 0.0
    %221 = vmatmul.mubr.f32.gmra.mxu0 %v124
    %v222 = vpop.f32.mrf.mxu0
    %v223 = vadd.f32 %v86, %v222
    %v224 = vpop.f32.mrf.mxu0
    %v225 = vadd.f32 %v90, %v224
    %226 = vmatprep.mubr.f32.mxu0 0.0
    %227 = vmatmul.mubr.f32.gmra.mxu0 %v127
    %v228 = vpop.f32.mrf.mxu0
    %v229 = vadd.f32 %v86, %v228
    %v230 = vpop.f32.mrf.mxu0
    %v231 = vadd.f32 %v90, %v230
    %232 = vmatprep.mubr.f32.mxu0 0.0
    %233 = vmatmul.mubr.f32.gmra.mxu0 %v130
    %v234 = vpop.f32.mrf.mxu0
    %v235 = vadd.f32 %v86, %v234
    %v236 = vpop.f32.mrf.mxu0
    %v237 = vadd.f32 %v90, %v236
    %238 = vmatprep.mubr.f32.mxu0 0.0
    %239 = vmatmul.mubr.f32.gmra.mxu0 %v133
    %v240 = vpop.f32.mrf.mxu0
    %v241 = vadd.f32 %v86, %v240
    %v242 = vpop.f32.mrf.mxu0
    %v243 = vadd.f32 %v90, %v242
    %244 = vmatprep.mubr.f32.mxu0 0.0
    %245 = vmatmul.mubr.f32.gmra.mxu0 %v136
    %v246 = vpop.f32.mrf.mxu0
    %v247 = vadd.f32 %v86, %v246
    %v248 = vpop.f32.mrf.mxu0
    %v249 = vadd.f32 %v90, %v248
    %250 = vdwg.mxu0
    %251 = vmatprep.subr.mxu0 0.0
    %252 = vmatpush1.msra.mxu0 0.0
    %253 = vmatprep.subr.mxu0 0.0
    %254 = vmatpush1.msra.mxu0 0.0
    %255 = vmatprep.subr.mxu0 0.0
    %256 = vmatpush1.msra.mxu0 0.0
    %257 = vmatprep.subr.mxu0 0.0
    %258 = vmatpush1.msra.mxu0 0.0
    %259 = vmatprep.subr.mxu0 0.0
    %260 = vmatpush1.msra.mxu0 0.0
    %261 = vmatprep.subr.mxu0 0.0
    %262 = vmatpush1.msra.mxu0 0.0
    %263 = vmatprep.subr.mxu0 0.0
    %264 = vmatpush1.msra.mxu0 0.0
    %265 = vmatprep.subr.mxu0 0.0
    %266 = vmatpush1.msra.mxu0 0.0
    %267 = vmatprep.subr.mxu0 0.0
    %268 = vmatpush1.msra.mxu0 0.0
    %269 = vmatprep.subr.mxu0 0.0
    %270 = vmatpush1.msra.mxu0 0.0
    %271 = vmatprep.subr.mxu0 0.0
    %272 = vmatpush1.msra.mxu0 0.0
    %273 = vmatprep.subr.mxu0 0.0
    %274 = vmatpush1.msra.mxu0 0.0
    %275 = vmatprep.subr.mxu0 0.0
    %276 = vmatpush1.msra.mxu0 %v32
    %277 = vmatprep.subr.mxu0 0.0
    %278 = vmatpush1.msra.mxu0 %v29
    %279 = vmatprep.subr.mxu0 0.0
    %280 = vmatpush1.msra.mxu0 %v26
    %281 = vmatprep.subr.mxu0 0.0
    %282 = vmatpush1.msra.mxu0 %v23
    %283 = vmatprep.subr.mxu0 0.0
    %284 = vmatpush2.msra.mxu0 0.0
    %285 = vmatprep.subr.mxu0 0.0
    %286 = vmatpush2.msra.mxu0 0.0
    %287 = vmatprep.subr.mxu0 0.0
    %288 = vmatpush2.msra.mxu0 0.0
    %289 = vmatprep.subr.mxu0 0.0
    %290 = vmatpush2.msra.mxu0 0.0
    %291 = vmatprep.subr.mxu0 0.0
    %292 = vmatpush2.msra.mxu0 0.0
    %293 = vmatprep.subr.mxu0 0.0
    %294 = vmatpush2.msra.mxu0 0.0
    %295 = vmatprep.subr.mxu0 0.0
    %296 = vmatpush2.msra.mxu0 0.0
    %297 = vmatprep.subr.mxu0 0.0
    %298 = vmatpush2.msra.mxu0 0.0
    %299 = vmatprep.subr.mxu0 0.0
    %300 = vmatpush2.msra.mxu0 0.0
    %301 = vmatprep.subr.mxu0 0.0
    %302 = vmatpush2.msra.mxu0 0.0
    %303 = vmatprep.subr.mxu0 0.0
    %304 = vmatpush2.msra.mxu0 0.0
    %305 = vmatprep.subr.mxu0 0.0
    %306 = vmatpush2.msra.mxu0 0.0
    %307 = vmatprep.subr.mxu0 0.0
    %308 = vmatpush2.msra.mxu0 0.0
    %309 = vmatprep.subr.mxu0 0.0
    %310 = vmatpush2.msra.mxu0 0.0
    %311 = vmatprep.subr.mxu0 0.0
    %312 = vmatpush2.msra.mxu0 0.0
    %313 = vmatprep.subr.mxu0 0.0
    %314 = vmatpush2.msra.mxu0 0.0
    %315 = vmatprep.mubr.f32.mxu0 0.0
    %316 = vmatmul.mubr.f32.gmra.mxu0 %v115
    %v317 = vpop.f32.mrf.mxu0
    %v318 = vadd.f32 %v94, %v317
    %v319 = vpop.f32.mrf.mxu0
    %320 = vmatprep.mubr.f32.mxu0 0.0
    %321 = vmatmul.mubr.f32.gmra.mxu0 %v118
    %v322 = vpop.f32.mrf.mxu0
    %v323 = vadd.f32 %v94, %v322
    %v324 = vpop.f32.mrf.mxu0
    %325 = vmatprep.mubr.f32.mxu0 0.0
    %326 = vmatmul.mubr.f32.gmra.mxu0 %v121
    %v327 = vpop.f32.mrf.mxu0
    %v328 = vadd.f32 %v94, %v327
    %v329 = vpop.f32.mrf.mxu0
    %330 = vmatprep.mubr.f32.mxu0 0.0
    %331 = vmatmul.mubr.f32.gmra.mxu0 %v124
    %v332 = vpop.f32.mrf.mxu0
    %v333 = vadd.f32 %v94, %v332
    %v334 = vpop.f32.mrf.mxu0
    %335 = vmatprep.mubr.f32.mxu0 0.0
    %336 = vmatmul.mubr.f32.gmra.mxu0 %v127
    %v337 = vpop.f32.mrf.mxu0
    %v338 = vadd.f32 %v94, %v337
    %v339 = vpop.f32.mrf.mxu0
    %340 = vmatprep.mubr.f32.mxu0 0.0
    %341 = vmatmul.mubr.f32.gmra.mxu0 %v130
    %v342 = vpop.f32.mrf.mxu0
    %v343 = vadd.f32 %v94, %v342
    %v344 = vpop.f32.mrf.mxu0
    %345 = vmatprep.mubr.f32.mxu0 0.0
    %346 = vmatmul.mubr.f32.gmra.mxu0 %v133
    %v347 = vpop.f32.mrf.mxu0
    %v348 = vadd.f32 %v94, %v347
    %v349 = vpop.f32.mrf.mxu0
    %350 = vmatprep.mubr.f32.mxu0 0.0
    %351 = vmatmul.mubr.f32.gmra.mxu0 %v136
    %v352 = vpop.f32.mrf.mxu0
    %v353 = vadd.f32 %v94, %v352
    %v354 = vpop.f32.mrf.mxu0
    %355 = vdwg.mxu0
    %356 = vmatprep.subr.mxu0 %v79
    %357 = vmatpush1.msra.mxu0 %v78
    %358 = vmatprep.subr.mxu0 %v76
    %359 = vmatpush1.msra.mxu0 %v75
    %360 = vmatprep.subr.mxu0 %v73
    %361 = vmatpush1.msra.mxu0 %v72
    %362 = vmatprep.subr.mxu0 %v70
    %363 = vmatpush1.msra.mxu0 %v69
    %364 = vmatprep.subr.mxu0 %v67
    %365 = vmatpush1.msra.mxu0 %v66
    %366 = vmatprep.subr.mxu0 %v64
    %367 = vmatpush1.msra.mxu0 %v63
    %368 = vmatprep.subr.mxu0 %v61
    %369 = vmatpush1.msra.mxu0 %v60
    %370 = vmatprep.subr.mxu0 %v58
    %371 = vmatpush1.msra.mxu0 %v57
    %372 = vmatprep.subr.mxu0 %v55
    %373 = vmatpush1.msra.mxu0 %v54
    %374 = vmatprep.subr.mxu0 %v52
    %375 = vmatpush1.msra.mxu0 %v51
    %376 = vmatprep.subr.mxu0 %v49
    %377 = vmatpush1.msra.mxu0 %v48
    %378 = vmatprep.subr.mxu0 %v46
    %379 = vmatpush1.msra.mxu0 %v45
    %380 = vmatprep.subr.mxu0 %v43
    %381 = vmatpush1.msra.mxu0 %v42
    %382 = vmatprep.subr.mxu0 %v40
    %383 = vmatpush1.msra.mxu0 %v39
    %384 = vmatprep.subr.mxu0 %v37
    %385 = vmatpush1.msra.mxu0 %v36
    %386 = vmatprep.subr.mxu0 %v34
    %387 = vmatpush1.msra.mxu0 %v33
    %388 = vmatprep.subr.mxu0 0.0
    %389 = vmatpush2.msra.mxu0 0.0
    %390 = vmatprep.subr.mxu0 0.0
    %391 = vmatpush2.msra.mxu0 0.0
    %392 = vmatprep.subr.mxu0 0.0
    %393 = vmatpush2.msra.mxu0 0.0
    %394 = vmatprep.subr.mxu0 0.0
    %395 = vmatpush2.msra.mxu0 0.0
    %396 = vmatprep.subr.mxu0 0.0
    %397 = vmatpush2.msra.mxu0 0.0
    %398 = vmatprep.subr.mxu0 0.0
    %399 = vmatpush2.msra.mxu0 0.0
    %400 = vmatprep.subr.mxu0 0.0
    %401 = vmatpush2.msra.mxu0 0.0
    %402 = vmatprep.subr.mxu0 0.0
    %403 = vmatpush2.msra.mxu0 0.0
    %404 = vmatprep.subr.mxu0 0.0
    %405 = vmatpush2.msra.mxu0 0.0
    %406 = vmatprep.subr.mxu0 0.0
    %407 = vmatpush2.msra.mxu0 0.0
    %408 = vmatprep.subr.mxu0 0.0
    %409 = vmatpush2.msra.mxu0 0.0
    %410 = vmatprep.subr.mxu0 0.0
    %411 = vmatpush2.msra.mxu0 0.0
    %412 = vmatprep.subr.mxu0 0.0
    %413 = vmatpush2.msra.mxu0 0.0
    %414 = vmatprep.subr.mxu0 0.0
    %415 = vmatpush2.msra.mxu0 0.0
    %416 = vmatprep.subr.mxu0 0.0
    %417 = vmatpush2.msra.mxu0 0.0
    %418 = vmatprep.subr.mxu0 0.0
    %419 = vmatpush2.msra.mxu0 0.0
    %420 = vmatprep.mubr.f32.mxu0 0.0
    %421 = vmatmul.mubr.f32.gmra.mxu0 0.0
    %v422 = vpop.f32.mrf.mxu0
    %v423 = vadd.f32 0.0, %v422
    %v424 = vpop.f32.mrf.mxu0
    %v425 = vadd.f32 0.0, %v424
    %426 = vdwg.mxu0
    %427 = vmatprep.subr.mxu0 0.0
    %428 = vmatpush1.msra.mxu0 %v80
    %429 = vmatprep.subr.mxu0 0.0
    %430 = vmatpush1.msra.mxu0 %v77
    %431 = vmatprep.subr.mxu0 0.0
    %432 = vmatpush1.msra.mxu0 %v74
    %433 = vmatprep.subr.mxu0 0.0
    %434 = vmatpush1.msra.mxu0 %v71
    %435 = vmatprep.subr.mxu0 0.0
    %436 = vmatpush1.msra.mxu0 %v68
    %437 = vmatprep.subr.mxu0 0.0
    %438 = vmatpush1.msra.mxu0 %v65
    %439 = vmatprep.subr.mxu0 0.0
    %440 = vmatpush1.msra.mxu0 %v62
    %441 = vmatprep.subr.mxu0 0.0
    %442 = vmatpush1.msra.mxu0 %v59
    %443 = vmatprep.subr.mxu0 0.0
    %444 = vmatpush1.msra.mxu0 %v56
    %445 = vmatprep.subr.mxu0 0.0
    %446 = vmatpush1.msra.mxu0 %v53
    %447 = vmatprep.subr.mxu0 0.0
    %448 = vmatpush1.msra.mxu0 %v50
    %449 = vmatprep.subr.mxu0 0.0
    %450 = vmatpush1.msra.mxu0 %v47
    %451 = vmatprep.subr.mxu0 0.0
    %452 = vmatpush1.msra.mxu0 %v44
    %453 = vmatprep.subr.mxu0 0.0
    %454 = vmatpush1.msra.mxu0 %v41
    %455 = vmatprep.subr.mxu0 0.0
    %456 = vmatpush1.msra.mxu0 %v38
    %457 = vmatprep.subr.mxu0 0.0
    %458 = vmatpush1.msra.mxu0 %v35
    %459 = vmatprep.subr.mxu0 0.0
    %460 = vmatpush2.msra.mxu0 0.0
    %461 = vmatprep.subr.mxu0 0.0
    %462 = vmatpush2.msra.mxu0 0.0
    %463 = vmatprep.subr.mxu0 0.0
    %464 = vmatpush2.msra.mxu0 0.0
    %465 = vmatprep.subr.mxu0 0.0
    %466 = vmatpush2.msra.mxu0 0.0
    %467 = vmatprep.subr.mxu0 0.0
    %468 = vmatpush2.msra.mxu0 0.0
    %469 = vmatprep.subr.mxu0 0.0
    %470 = vmatpush2.msra.mxu0 0.0
    %471 = vmatprep.subr.mxu0 0.0
    %472 = vmatpush2.msra.mxu0 0.0
    %473 = vmatprep.subr.mxu0 0.0
    %474 = vmatpush2.msra.mxu0 0.0
    %475 = vmatprep.subr.mxu0 0.0
    %476 = vmatpush2.msra.mxu0 0.0
    %477 = vmatprep.subr.mxu0 0.0
    %478 = vmatpush2.msra.mxu0 0.0
    %479 = vmatprep.subr.mxu0 0.0
    %480 = vmatpush2.msra.mxu0 0.0
    %481 = vmatprep.subr.mxu0 0.0
    %482 = vmatpush2.msra.mxu0 0.0
    %483 = vmatprep.subr.mxu0 0.0
    %484 = vmatpush2.msra.mxu0 0.0
    %485 = vmatprep.subr.mxu0 0.0
    %486 = vmatpush2.msra.mxu0 0.0
    %487 = vmatprep.subr.mxu0 0.0
    %488 = vmatpush2.msra.mxu0 0.0
    %489 = vmatprep.subr.mxu0 0.0
    %490 = vmatpush2.msra.mxu0 0.0
    %491 = vmatprep.mubr.f32.mxu0 0.0
    %492 = vmatmul.mubr.f32.gmra.mxu0 0.0
    %v493 = vpop.f32.mrf.mxu0
    %v494 = vadd.f32 0.0, %v493
    %v495 = vpop.f32.mrf.mxu0
    %496 = vdwg.mxu0
    %v497 = vadd.f32 %v205, %v423
    %v498 = vxor.u32 %v497, 2147483648
    %v499 = vmul.f32 %v498, 1.442695
    %v500 = vpow.pop %v499
    %v501 = vadd.f32 %v500, 1.0
    %v502 = vrcp.pop %v501
    %v503 = vmul.f32 1.0, %v502
    %v504 = vadd.f32 %v207, %v425
    %v505 = vxor.u32 %v504, 2147483648
    %v506 = vmul.f32 %v505, 1.442695
    %v507 = vpow.pop %v506
    %v508 = vadd.f32 %v507, 1.0
    %v509 = vrcp.pop %v508
    %v510 = vmul.f32 1.0, %v509
    %v511 = vadd.f32 %v494, %v103
    %v512 = vmul.f32 %v503, %v511
    %v513 = vadd.f32 %v318, %v512
    %v514 = vtanh.pop %v513
    %v515 = vsub.f32 1.0, %v510
    %v516 = vmul.f32 %v515, %v514
    %v517 = vmul.f32 %v510, 0.0
    %v518 = vadd.f32 %v516, %v517
    %519 = vmatprep.subr.mxu0 %v79
    %520 = vmatpush1.msra.mxu0 %v78
    %521 = vmatprep.subr.mxu0 %v76
    %522 = vmatpush1.msra.mxu0 %v75
    %523 = vmatprep.subr.mxu0 %v73
    %524 = vmatpush1.msra.mxu0 %v72
    %525 = vmatprep.subr.mxu0 %v70
    %526 = vmatpush1.msra.mxu0 %v69
    %527 = vmatprep.subr.mxu0 %v67
    %528 = vmatpush1.msra.mxu0 %v66
    %529 = vmatprep.subr.mxu0 %v64
    %530 = vmatpush1.msra.mxu0 %v63
    %531 = vmatprep.subr.mxu0 %v61
    %532 = vmatpush1.msra.mxu0 %v60
    %533 = vmatprep.subr.mxu0 %v58
    %534 = vmatpush1.msra.mxu0 %v57
    %535 = vmatprep.subr.mxu0 %v55
    %536 = vmatpush1.msra.mxu0 %v54
    %537 = vmatprep.subr.mxu0 %v52
    %538 = vmatpush1.msra.mxu0 %v51
    %539 = vmatprep.subr.mxu0 %v49
    %540 = vmatpush1.msra.mxu0 %v48
    %541 = vmatprep.subr.mxu0 %v46
    %542 = vmatpush1.msra.mxu0 %v45
    %543 = vmatprep.subr.mxu0 %v43
    %544 = vmatpush1.msra.mxu0 %v42
    %545 = vmatprep.subr.mxu0 %v40
    %546 = vmatpush1.msra.mxu0 %v39
    %547 = vmatprep.subr.mxu0 %v37
    %548 = vmatpush1.msra.mxu0 %v36
    %549 = vmatprep.subr.mxu0 %v34
    %550 = vmatpush1.msra.mxu0 %v33
    %551 = vmatprep.subr.mxu0 0.0
    %552 = vmatpush2.msra.mxu0 0.0
    %553 = vmatprep.subr.mxu0 0.0
    %554 = vmatpush2.msra.mxu0 0.0
    %555 = vmatprep.subr.mxu0 0.0
    %556 = vmatpush2.msra.mxu0 0.0
    %557 = vmatprep.subr.mxu0 0.0
    %558 = vmatpush2.msra.mxu0 0.0
    %559 = vmatprep.subr.mxu0 0.0
    %560 = vmatpush2.msra.mxu0 0.0
    %561 = vmatprep.subr.mxu0 0.0
    %562 = vmatpush2.msra.mxu0 0.0
    %563 = vmatprep.subr.mxu0 0.0
    %564 = vmatpush2.msra.mxu0 0.0
    %565 = vmatprep.subr.mxu0 0.0
    %566 = vmatpush2.msra.mxu0 0.0
    %567 = vmatprep.subr.mxu0 0.0
    %568 = vmatpush2.msra.mxu0 0.0
    %569 = vmatprep.subr.mxu0 0.0
    %570 = vmatpush2.msra.mxu0 0.0
    %571 = vmatprep.subr.mxu0 0.0
    %572 = vmatpush2.msra.mxu0 0.0
    %573 = vmatprep.subr.mxu0 0.0
    %574 = vmatpush2.msra.mxu0 0.0
    %575 = vmatprep.subr.mxu0 0.0
    %576 = vmatpush2.msra.mxu0 0.0
    %577 = vmatprep.subr.mxu0 0.0
    %578 = vmatpush2.msra.mxu0 0.0
    %579 = vmatprep.subr.mxu0 0.0
    %580 = vmatpush2.msra.mxu0 0.0
    %581 = vmatprep.subr.mxu0 0.0
    %582 = vmatpush2.msra.mxu0 0.0
    %583 = vmatprep.mubr.f32.mxu0 0.0
    %584 = vmatmul.mubr.f32.gmra.mxu0 %v518
    %v585 = vpop.f32.mrf.mxu0
    %v586 = vadd.f32 0.0, %v585
    %v587 = vpop.f32.mrf.mxu0
    %v588 = vadd.f32 0.0, %v587
    %589 = vdwg.mxu0
    %590 = vmatprep.subr.mxu0 0.0
    %591 = vmatpush1.msra.mxu0 %v80
    %592 = vmatprep.subr.mxu0 0.0
    %593 = vmatpush1.msra.mxu0 %v77
    %594 = vmatprep.subr.mxu0 0.0
    %595 = vmatpush1.msra.mxu0 %v74
    %596 = vmatprep.subr.mxu0 0.0
    %597 = vmatpush1.msra.mxu0 %v71
    %598 = vmatprep.subr.mxu0 0.0
    %599 = vmatpush1.msra.mxu0 %v68
    %600 = vmatprep.subr.mxu0 0.0
    %601 = vmatpush1.msra.mxu0 %v65
    %602 = vmatprep.subr.mxu0 0.0
    %603 = vmatpush1.msra.mxu0 %v62
    %604 = vmatprep.subr.mxu0 0.0
    %605 = vmatpush1.msra.mxu0 %v59
    %606 = vmatprep.subr.mxu0 0.0
    %607 = vmatpush1.msra.mxu0 %v56
    %608 = vmatprep.subr.mxu0 0.0
    %609 = vmatpush1.msra.mxu0 %v53
    %610 = vmatprep.subr.mxu0 0.0
    %611 = vmatpush1.msra.mxu0 %v50
    %612 = vmatprep.subr.mxu0 0.0
    %613 = vmatpush1.msra.mxu0 %v47
    %614 = vmatprep.subr.mxu0 0.0
    %615 = vmatpush1.msra.mxu0 %v44
    %616 = vmatprep.subr.mxu0 0.0
    %617 = vmatpush1.msra.mxu0 %v41
    %618 = vmatprep.subr.mxu0 0.0
    %619 = vmatpush1.msra.mxu0 %v38
    %620 = vmatprep.subr.mxu0 0.0
    %621 = vmatpush1.msra.mxu0 %v35
    %622 = vmatprep.subr.mxu0 0.0
    %623 = vmatpush2.msra.mxu0 0.0
    %624 = vmatprep.subr.mxu0 0.0
    %625 = vmatpush2.msra.mxu0 0.0
    %626 = vmatprep.subr.mxu0 0.0
    %627 = vmatpush2.msra.mxu0 0.0
    %628 = vmatprep.subr.mxu0 0.0
    %629 = vmatpush2.msra.mxu0 0.0
    %630 = vmatprep.subr.mxu0 0.0
    %631 = vmatpush2.msra.mxu0 0.0
    %632 = vmatprep.subr.mxu0 0.0
    %633 = vmatpush2.msra.mxu0 0.0
    %634 = vmatprep.subr.mxu0 0.0
    %635 = vmatpush2.msra.mxu0 0.0
    %636 = vmatprep.subr.mxu0 0.0
    %637 = vmatpush2.msra.mxu0 0.0
    %638 = vmatprep.subr.mxu0 0.0
    %639 = vmatpush2.msra.mxu0 0.0
    %640 = vmatprep.subr.mxu0 0.0
    %641 = vmatpush2.msra.mxu0 0.0
    %642 = vmatprep.subr.mxu0 0.0
    %643 = vmatpush2.msra.mxu0 0.0
    %644 = vmatprep.subr.mxu0 0.0
    %645 = vmatpush2.msra.mxu0 0.0
    %646 = vmatprep.subr.mxu0 0.0
    %647 = vmatpush2.msra.mxu0 0.0
    %648 = vmatprep.subr.mxu0 0.0
    %649 = vmatpush2.msra.mxu0 0.0
    %650 = vmatprep.subr.mxu0 0.0
    %651 = vmatpush2.msra.mxu0 0.0
    %652 = vmatprep.subr.mxu0 0.0
    %653 = vmatpush2.msra.mxu0 0.0
    %654 = vmatprep.mubr.f32.mxu0 0.0
    %655 = vmatmul.mubr.f32.gmra.mxu0 %v518
    %v656 = vpop.f32.mrf.mxu0
    %v657 = vadd.f32 0.0, %v656
    %v658 = vpop.f32.mrf.mxu0
    %659 = vdwg.mxu0
    %v660 = vadd.f32 %v211, %v586
    %v661 = vxor.u32 %v660, 2147483648
    %v662 = vmul.f32 %v661, 1.442695
    %v663 = vpow.pop %v662
    %v664 = vadd.f32 %v663, 1.0
    %v665 = vrcp.pop %v664
    %v666 = vmul.f32 1.0, %v665
    %v667 = vadd.f32 %v213, %v588
    %v668 = vxor.u32 %v667, 2147483648
    %v669 = vmul.f32 %v668, 1.442695
    %v670 = vpow.pop %v669
    %v671 = vadd.f32 %v670, 1.0
    %v672 = vrcp.pop %v671
    %v673 = vmul.f32 1.0, %v672
    %v674 = vadd.f32 %v657, %v103
    %v675 = vmul.f32 %v666, %v674
    %v676 = vadd.f32 %v323, %v675
    %v677 = vtanh.pop %v676
    %v678 = vsub.f32 1.0, %v673
    %v679 = vmul.f32 %v678, %v677
    %v680 = vmul.f32 %v673, %v518
    %v681 = vadd.f32 %v679, %v680
    %682 = vmatprep.subr.mxu0 %v79
    %683 = vmatpush1.msra.mxu0 %v78
    %684 = vmatprep.subr.mxu0 %v76
    %685 = vmatpush1.msra.mxu0 %v75
    %686 = vmatprep.subr.mxu0 %v73
    %687 = vmatpush1.msra.mxu0 %v72
    %688 = vmatprep.subr.mxu0 %v70
    %689 = vmatpush1.msra.mxu0 %v69
    %690 = vmatprep.subr.mxu0 %v67
    %691 = vmatpush1.msra.mxu0 %v66
    %692 = vmatprep.subr.mxu0 %v64
    %693 = vmatpush1.msra.mxu0 %v63
    %694 = vmatprep.subr.mxu0 %v61
    %695 = vmatpush1.msra.mxu0 %v60
    %696 = vmatprep.subr.mxu0 %v58
    %697 = vmatpush1.msra.mxu0 %v57
    %698 = vmatprep.subr.mxu0 %v55
    %699 = vmatpush1.msra.mxu0 %v54
    %700 = vmatprep.subr.mxu0 %v52
    %701 = vmatpush1.msra.mxu0 %v51
    %702 = vmatprep.subr.mxu0 %v49
    %703 = vmatpush1.msra.mxu0 %v48
    %704 = vmatprep.subr.mxu0 %v46
    %705 = vmatpush1.msra.mxu0 %v45
    %706 = vmatprep.subr.mxu0 %v43
    %707 = vmatpush1.msra.mxu0 %v42
    %708 = vmatprep.subr.mxu0 %v40
    %709 = vmatpush1.msra.mxu0 %v39
    %710 = vmatprep.subr.mxu0 %v37
    %711 = vmatpush1.msra.mxu0 %v36
    %712 = vmatprep.subr.mxu0 %v34
    %713 = vmatpush1.msra.mxu0 %v33
    %714 = vmatprep.subr.mxu0 0.0
    %715 = vmatpush2.msra.mxu0 0.0
    %716 = vmatprep.subr.mxu0 0.0
    %717 = vmatpush2.msra.mxu0 0.0
    %718 = vmatprep.subr.mxu0 0.0
    %719 = vmatpush2.msra.mxu0 0.0
    %720 = vmatprep.subr.mxu0 0.0
    %721 = vmatpush2.msra.mxu0 0.0
    %722 = vmatprep.subr.mxu0 0.0
    %723 = vmatpush2.msra.mxu0 0.0
    %724 = vmatprep.subr.mxu0 0.0
    %725 = vmatpush2.msra.mxu0 0.0
    %726 = vmatprep.subr.mxu0 0.0
    %727 = vmatpush2.msra.mxu0 0.0
    %728 = vmatprep.subr.mxu0 0.0
    %729 = vmatpush2.msra.mxu0 0.0
    %730 = vmatprep.subr.mxu0 0.0
    %731 = vmatpush2.msra.mxu0 0.0
    %732 = vmatprep.subr.mxu0 0.0
    %733 = vmatpush2.msra.mxu0 0.0
    %734 = vmatprep.subr.mxu0 0.0
    %735 = vmatpush2.msra.mxu0 0.0
    %736 = vmatprep.subr.mxu0 0.0
    %737 = vmatpush2.msra.mxu0 0.0
    %738 = vmatprep.subr.mxu0 0.0
    %739 = vmatpush2.msra.mxu0 0.0
    %740 = vmatprep.subr.mxu0 0.0
    %741 = vmatpush2.msra.mxu0 0.0
    %742 = vmatprep.subr.mxu0 0.0
    %743 = vmatpush2.msra.mxu0 0.0
    %744 = vmatprep.subr.mxu0 0.0
    %745 = vmatpush2.msra.mxu0 0.0
    %746 = vmatprep.mubr.f32.mxu0 0.0
    %747 = vmatmul.mubr.f32.gmra.mxu0 %v681
    %v748 = vpop.f32.mrf.mxu0
    %v749 = vadd.f32 0.0, %v748
    %v750 = vpop.f32.mrf.mxu0
    %v751 = vadd.f32 0.0, %v750
    %752 = vdwg.mxu0
    %753 = vmatprep.subr.mxu0 0.0
    %754 = vmatpush1.msra.mxu0 %v80
    %755 = vmatprep.subr.mxu0 0.0
    %756 = vmatpush1.msra.mxu0 %v77
    %757 = vmatprep.subr.mxu0 0.0
    %758 = vmatpush1.msra.mxu0 %v74
    %759 = vmatprep.subr.mxu0 0.0
    %760 = vmatpush1.msra.mxu0 %v71
    %761 = vmatprep.subr.mxu0 0.0
    %762 = vmatpush1.msra.mxu0 %v68
    %763 = vmatprep.subr.mxu0 0.0
    %764 = vmatpush1.msra.mxu0 %v65
    %765 = vmatprep.subr.mxu0 0.0
    %766 = vmatpush1.msra.mxu0 %v62
    %767 = vmatprep.subr.mxu0 0.0
    %768 = vmatpush1.msra.mxu0 %v59
    %769 = vmatprep.subr.mxu0 0.0
    %770 = vmatpush1.msra.mxu0 %v56
    %771 = vmatprep.subr.mxu0 0.0
    %772 = vmatpush1.msra.mxu0 %v53
    %773 = vmatprep.subr.mxu0 0.0
    %774 = vmatpush1.msra.mxu0 %v50
    %775 = vmatprep.subr.mxu0 0.0
    %776 = vmatpush1.msra.mxu0 %v47
    %777 = vmatprep.subr.mxu0 0.0
    %778 = vmatpush1.msra.mxu0 %v44
    %779 = vmatprep.subr.mxu0 0.0
    %780 = vmatpush1.msra.mxu0 %v41
    %781 = vmatprep.subr.mxu0 0.0
    %782 = vmatpush1.msra.mxu0 %v38
    %783 = vmatprep.subr.mxu0 0.0
    %784 = vmatpush1.msra.mxu0 %v35
    %785 = vmatprep.subr.mxu0 0.0
    %786 = vmatpush2.msra.mxu0 0.0
    %787 = vmatprep.subr.mxu0 0.0
    %788 = vmatpush2.msra.mxu0 0.0
    %789 = vmatprep.subr.mxu0 0.0
    %790 = vmatpush2.msra.mxu0 0.0
    %791 = vmatprep.subr.mxu0 0.0
    %792 = vmatpush2.msra.mxu0 0.0
    %793 = vmatprep.subr.mxu0 0.0
    %794 = vmatpush2.msra.mxu0 0.0
    %795 = vmatprep.subr.mxu0 0.0
    %796 = vmatpush2.msra.mxu0 0.0
    %797 = vmatprep.subr.mxu0 0.0
    %798 = vmatpush2.msra.mxu0 0.0
    %799 = vmatprep.subr.mxu0 0.0
    %800 = vmatpush2.msra.mxu0 0.0
    %801 = vmatprep.subr.mxu0 0.0
    %802 = vmatpush2.msra.mxu0 0.0
    %803 = vmatprep.subr.mxu0 0.0
    %804 = vmatpush2.msra.mxu0 0.0
    %805 = vmatprep.subr.mxu0 0.0
    %806 = vmatpush2.msra.mxu0 0.0
    %807 = vmatprep.subr.mxu0 0.0
    %808 = vmatpush2.msra.mxu0 0.0
    %809 = vmatprep.subr.mxu0 0.0
    %810 = vmatpush2.msra.mxu0 0.0
    %811 = vmatprep.subr.mxu0 0.0
    %812 = vmatpush2.msra.mxu0 0.0
    %813 = vmatprep.subr.mxu0 0.0
    %814 = vmatpush2.msra.mxu0 0.0
    %815 = vmatprep.subr.mxu0 0.0
    %816 = vmatpush2.msra.mxu0 0.0
    %817 = vmatprep.mubr.f32.mxu0 0.0
    %818 = vmatmul.mubr.f32.gmra.mxu0 %v681
    %v819 = vpop.f32.mrf.mxu0
    %v820 = vadd.f32 0.0, %v819
    %v821 = vpop.f32.mrf.mxu0
    %822 = vdwg.mxu0
    %v823 = vadd.f32 %v217, %v749
    %v824 = vxor.u32 %v823, 2147483648
    %v825 = vmul.f32 %v824, 1.442695
    %v826 = vpow.pop %v825
    %v827 = vadd.f32 %v826, 1.0
    %v828 = vrcp.pop %v827
    %v829 = vmul.f32 1.0, %v828
    %v830 = vadd.f32 %v219, %v751
    %v831 = vxor.u32 %v830, 2147483648
    %v832 = vmul.f32 %v831, 1.442695
    %v833 = vpow.pop %v832
    %v834 = vadd.f32 %v833, 1.0
    %v835 = vrcp.pop %v834
    %v836 = vmul.f32 1.0, %v835
    %v837 = vadd.f32 %v820, %v103
    %v838 = vmul.f32 %v829, %v837
    %v839 = vadd.f32 %v328, %v838
    %v840 = vtanh.pop %v839
    %v841 = vsub.f32 1.0, %v836
    %v842 = vmul.f32 %v841, %v840
    %v843 = vmul.f32 %v836, %v681
    %v844 = vadd.f32 %v842, %v843
    %845 = vmatprep.subr.mxu0 %v79
    %846 = vmatpush1.msra.mxu0 %v78
    %847 = vmatprep.subr.mxu0 %v76
    %848 = vmatpush1.msra.mxu0 %v75
    %849 = vmatprep.subr.mxu0 %v73
    %850 = vmatpush1.msra.mxu0 %v72
    %851 = vmatprep.subr.mxu0 %v70
    %852 = vmatpush1.msra.mxu0 %v69
    %853 = vmatprep.subr.mxu0 %v67
    %854 = vmatpush1.msra.mxu0 %v66
    %855 = vmatprep.subr.mxu0 %v64
    %856 = vmatpush1.msra.mxu0 %v63
    %857 = vmatprep.subr.mxu0 %v61
    %858 = vmatpush1.msra.mxu0 %v60
    %859 = vmatprep.subr.mxu0 %v58
    %860 = vmatpush1.msra.mxu0 %v57
    %861 = vmatprep.subr.mxu0 %v55
    %862 = vmatpush1.msra.mxu0 %v54
    %863 = vmatprep.subr.mxu0 %v52
    %864 = vmatpush1.msra.mxu0 %v51
    %865 = vmatprep.subr.mxu0 %v49
    %866 = vmatpush1.msra.mxu0 %v48
    %867 = vmatprep.subr.mxu0 %v46
    %868 = vmatpush1.msra.mxu0 %v45
    %869 = vmatprep.subr.mxu0 %v43
    %870 = vmatpush1.msra.mxu0 %v42
    %871 = vmatprep.subr.mxu0 %v40
    %872 = vmatpush1.msra.mxu0 %v39
    %873 = vmatprep.subr.mxu0 %v37
    %874 = vmatpush1.msra.mxu0 %v36
    %875 = vmatprep.subr.mxu0 %v34
    %876 = vmatpush1.msra.mxu0 %v33
    %877 = vmatprep.subr.mxu0 0.0
    %878 = vmatpush2.msra.mxu0 0.0
    %879 = vmatprep.subr.mxu0 0.0
    %880 = vmatpush2.msra.mxu0 0.0
    %881 = vmatprep.subr.mxu0 0.0
    %882 = vmatpush2.msra.mxu0 0.0
    %883 = vmatprep.subr.mxu0 0.0
    %884 = vmatpush2.msra.mxu0 0.0
    %885 = vmatprep.subr.mxu0 0.0
    %886 = vmatpush2.msra.mxu0 0.0
    %887 = vmatprep.subr.mxu0 0.0
    %888 = vmatpush2.msra.mxu0 0.0
    %889 = vmatprep.subr.mxu0 0.0
    %890 = vmatpush2.msra.mxu0 0.0
    %891 = vmatprep.subr.mxu0 0.0
    %892 = vmatpush2.msra.mxu0 0.0
    %893 = vmatprep.subr.mxu0 0.0
    %894 = vmatpush2.msra.mxu0 0.0
    %895 = vmatprep.subr.mxu0 0.0
    %896 = vmatpush2.msra.mxu0 0.0
    %897 = vmatprep.subr.mxu0 0.0
    %898 = vmatpush2.msra.mxu0 0.0
    %899 = vmatprep.subr.mxu0 0.0
    %900 = vmatpush2.msra.mxu0 0.0
    %901 = vmatprep.subr.mxu0 0.0
    %902 = vmatpush2.msra.mxu0 0.0
    %903 = vmatprep.subr.mxu0 0.0
    %904 = vmatpush2.msra.mxu0 0.0
    %905 = vmatprep.subr.mxu0 0.0
    %906 = vmatpush2.msra.mxu0 0.0
    %907 = vmatprep.subr.mxu0 0.0
    %908 = vmatpush2.msra.mxu0 0.0
    %909 = vmatprep.mubr.f32.mxu0 0.0
    %910 = vmatmul.mubr.f32.gmra.mxu0 %v844
    %v911 = vpop.f32.mrf.mxu0
    %v912 = vadd.f32 0.0, %v911
    %v913 = vpop.f32.mrf.mxu0
    %v914 = vadd.f32 0.0, %v913
    %915 = vdwg.mxu0
    %916 = vmatprep.subr.mxu0 0.0
    %917 = vmatpush1.msra.mxu0 %v80
    %918 = vmatprep.subr.mxu0 0.0
    %919 = vmatpush1.msra.mxu0 %v77
    %920 = vmatprep.subr.mxu0 0.0
    %921 = vmatpush1.msra.mxu0 %v74
    %922 = vmatprep.subr.mxu0 0.0
    %923 = vmatpush1.msra.mxu0 %v71
    %924 = vmatprep.subr.mxu0 0.0
    %925 = vmatpush1.msra.mxu0 %v68
    %926 = vmatprep.subr.mxu0 0.0
    %927 = vmatpush1.msra.mxu0 %v65
    %928 = vmatprep.subr.mxu0 0.0
    %929 = vmatpush1.msra.mxu0 %v62
    %930 = vmatprep.subr.mxu0 0.0
    %931 = vmatpush1.msra.mxu0 %v59
    %932 = vmatprep.subr.mxu0 0.0
    %933 = vmatpush1.msra.mxu0 %v56
    %934 = vmatprep.subr.mxu0 0.0
    %935 = vmatpush1.msra.mxu0 %v53
    %936 = vmatprep.subr.mxu0 0.0
    %937 = vmatpush1.msra.mxu0 %v50
    %938 = vmatprep.subr.mxu0 0.0
    %939 = vmatpush1.msra.mxu0 %v47
    %940 = vmatprep.subr.mxu0 0.0
    %941 = vmatpush1.msra.mxu0 %v44
    %942 = vmatprep.subr.mxu0 0.0
    %943 = vmatpush1.msra.mxu0 %v41
    %944 = vmatprep.subr.mxu0 0.0
    %945 = vmatpush1.msra.mxu0 %v38
    %946 = vmatprep.subr.mxu0 0.0
    %947 = vmatpush1.msra.mxu0 %v35
    %948 = vmatprep.subr.mxu0 0.0
    %949 = vmatpush2.msra.mxu0 0.0
    %950 = vmatprep.subr.mxu0 0.0
    %951 = vmatpush2.msra.mxu0 0.0
    %952 = vmatprep.subr.mxu0 0.0
    %953 = vmatpush2.msra.mxu0 0.0
    %954 = vmatprep.subr.mxu0 0.0
    %955 = vmatpush2.msra.mxu0 0.0
    %956 = vmatprep.subr.mxu0 0.0
    %957 = vmatpush2.msra.mxu0 0.0
    %958 = vmatprep.subr.mxu0 0.0
    %959 = vmatpush2.msra.mxu0 0.0
    %960 = vmatprep.subr.mxu0 0.0
    %961 = vmatpush2.msra.mxu0 0.0
    %962 = vmatprep.subr.mxu0 0.0
    %963 = vmatpush2.msra.mxu0 0.0
    %964 = vmatprep.subr.mxu0 0.0
    %965 = vmatpush2.msra.mxu0 0.0
    %966 = vmatprep.subr.mxu0 0.0
    %967 = vmatpush2.msra.mxu0 0.0
    %968 = vmatprep.subr.mxu0 0.0
    %969 = vmatpush2.msra.mxu0 0.0
    %970 = vmatprep.subr.mxu0 0.0
    %971 = vmatpush2.msra.mxu0 0.0
    %972 = vmatprep.subr.mxu0 0.0
    %973 = vmatpush2.msra.mxu0 0.0
    %974 = vmatprep.subr.mxu0 0.0
    %975 = vmatpush2.msra.mxu0 0.0
    %976 = vmatprep.subr.mxu0 0.0
    %977 = vmatpush2.msra.mxu0 0.0
    %978 = vmatprep.subr.mxu0 0.0
    %979 = vmatpush2.msra.mxu0 0.0
    %980 = vmatprep.mubr.f32.mxu0 0.0
    %981 = vmatmul.mubr.f32.gmra.mxu0 %v844
    %v982 = vpop.f32.mrf.mxu0
    %v983 = vadd.f32 0.0, %v982
    %v984 = vpop.f32.mrf.mxu0
    %985 = vdwg.mxu0
    %v986 = vadd.f32 %v223, %v912
    %v987 = vxor.u32 %v986, 2147483648
    %v988 = vmul.f32 %v987, 1.442695
    %v989 = vpow.pop %v988
    %v990 = vadd.f32 %v989, 1.0
    %v991 = vrcp.pop %v990
    %v992 = vmul.f32 1.0, %v991
    %v993 = vadd.f32 %v225, %v914
    %v994 = vxor.u32 %v993, 2147483648
    %v995 = vmul.f32 %v994, 1.442695
    %v996 = vpow.pop %v995
    %v997 = vadd.f32 %v996, 1.0
    %v998 = vrcp.pop %v997
    %v999 = vmul.f32 1.0, %v998
    %v1000 = vadd.f32 %v983, %v103
    %v1001 = vmul.f32 %v992, %v1000
    %v1002 = vadd.f32 %v333, %v1001
    %v1003 = vtanh.pop %v1002
    %v1004 = vsub.f32 1.0, %v999
    %v1005 = vmul.f32 %v1004, %v1003
    %v1006 = vmul.f32 %v999, %v844
    %v1007 = vadd.f32 %v1005, %v1006
    %1008 = vmatprep.subr.mxu0 %v79
    %1009 = vmatpush1.msra.mxu0 %v78
    %1010 = vmatprep.subr.mxu0 %v76
    %1011 = vmatpush1.msra.mxu0 %v75
    %1012 = vmatprep.subr.mxu0 %v73
    %1013 = vmatpush1.msra.mxu0 %v72
    %1014 = vmatprep.subr.mxu0 %v70
    %1015 = vmatpush1.msra.mxu0 %v69
    %1016 = vmatprep.subr.mxu0 %v67
    %1017 = vmatpush1.msra.mxu0 %v66
    %1018 = vmatprep.subr.mxu0 %v64
    %1019 = vmatpush1.msra.mxu0 %v63
    %1020 = vmatprep.subr.mxu0 %v61
    %1021 = vmatpush1.msra.mxu0 %v60
    %1022 = vmatprep.subr.mxu0 %v58
    %1023 = vmatpush1.msra.mxu0 %v57
    %1024 = vmatprep.subr.mxu0 %v55
    %1025 = vmatpush1.msra.mxu0 %v54
    %1026 = vmatprep.subr.mxu0 %v52
    %1027 = vmatpush1.msra.mxu0 %v51
    %1028 = vmatprep.subr.mxu0 %v49
    %1029 = vmatpush1.msra.mxu0 %v48
    %1030 = vmatprep.subr.mxu0 %v46
    %1031 = vmatpush1.msra.mxu0 %v45
    %1032 = vmatprep.subr.mxu0 %v43
    %1033 = vmatpush1.msra.mxu0 %v42
    %1034 = vmatprep.subr.mxu0 %v40
    %1035 = vmatpush1.msra.mxu0 %v39
    %1036 = vmatprep.subr.mxu0 %v37
    %1037 = vmatpush1.msra.mxu0 %v36
    %1038 = vmatprep.subr.mxu0 %v34
    %1039 = vmatpush1.msra.mxu0 %v33
    %1040 = vmatprep.subr.mxu0 0.0
    %1041 = vmatpush2.msra.mxu0 0.0
    %1042 = vmatprep.subr.mxu0 0.0
    %1043 = vmatpush2.msra.mxu0 0.0
    %1044 = vmatprep.subr.mxu0 0.0
    %1045 = vmatpush2.msra.mxu0 0.0
    %1046 = vmatprep.subr.mxu0 0.0
    %1047 = vmatpush2.msra.mxu0 0.0
    %1048 = vmatprep.subr.mxu0 0.0
    %1049 = vmatpush2.msra.mxu0 0.0
    %1050 = vmatprep.subr.mxu0 0.0
    %1051 = vmatpush2.msra.mxu0 0.0
    %1052 = vmatprep.subr.mxu0 0.0
    %1053 = vmatpush2.msra.mxu0 0.0
    %1054 = vmatprep.subr.mxu0 0.0
    %1055 = vmatpush2.msra.mxu0 0.0
    %1056 = vmatprep.subr.mxu0 0.0
    %1057 = vmatpush2.msra.mxu0 0.0
    %1058 = vmatprep.subr.mxu0 0.0
    %1059 = vmatpush2.msra.mxu0 0.0
    %1060 = vmatprep.subr.mxu0 0.0
    %1061 = vmatpush2.msra.mxu0 0.0
    %1062 = vmatprep.subr.mxu0 0.0
    %1063 = vmatpush2.msra.mxu0 0.0
    %1064 = vmatprep.subr.mxu0 0.0
    %1065 = vmatpush2.msra.mxu0 0.0
    %1066 = vmatprep.subr.mxu0 0.0
    %1067 = vmatpush2.msra.mxu0 0.0
    %1068 = vmatprep.subr.mxu0 0.0
    %1069 = vmatpush2.msra.mxu0 0.0
    %1070 = vmatprep.subr.mxu0 0.0
    %1071 = vmatpush2.msra.mxu0 0.0
    %1072 = vmatprep.mubr.f32.mxu0 0.0
    %1073 = vmatmul.mubr.f32.gmra.mxu0 %v1007
    %v1074 = vpop.f32.mrf.mxu0
    %v1075 = vadd.f32 0.0, %v1074
    %v1076 = vpop.f32.mrf.mxu0
    %v1077 = vadd.f32 0.0, %v1076
    %1078 = vdwg.mxu0
    %1079 = vmatprep.subr.mxu0 0.0
    %1080 = vmatpush1.msra.mxu0 %v80
    %1081 = vmatprep.subr.mxu0 0.0
    %1082 = vmatpush1.msra.mxu0 %v77
    %1083 = vmatprep.subr.mxu0 0.0
    %1084 = vmatpush1.msra.mxu0 %v74
    %1085 = vmatprep.subr.mxu0 0.0
    %1086 = vmatpush1.msra.mxu0 %v71
    %1087 = vmatprep.subr.mxu0 0.0
    %1088 = vmatpush1.msra.mxu0 %v68
    %1089 = vmatprep.subr.mxu0 0.0
    %1090 = vmatpush1.msra.mxu0 %v65
    %1091 = vmatprep.subr.mxu0 0.0
    %1092 = vmatpush1.msra.mxu0 %v62
    %1093 = vmatprep.subr.mxu0 0.0
    %1094 = vmatpush1.msra.mxu0 %v59
    %1095 = vmatprep.subr.mxu0 0.0
    %1096 = vmatpush1.msra.mxu0 %v56
    %1097 = vmatprep.subr.mxu0 0.0
    %1098 = vmatpush1.msra.mxu0 %v53
    %1099 = vmatprep.subr.mxu0 0.0
    %1100 = vmatpush1.msra.mxu0 %v50
    %1101 = vmatprep.subr.mxu0 0.0
    %1102 = vmatpush1.msra.mxu0 %v47
    %1103 = vmatprep.subr.mxu0 0.0
    %1104 = vmatpush1.msra.mxu0 %v44
    %1105 = vmatprep.subr.mxu0 0.0
    %1106 = vmatpush1.msra.mxu0 %v41
    %1107 = vmatprep.subr.mxu0 0.0
    %1108 = vmatpush1.msra.mxu0 %v38
    %1109 = vmatprep.subr.mxu0 0.0
    %1110 = vmatpush1.msra.mxu0 %v35
    %1111 = vmatprep.subr.mxu0 0.0
    %1112 = vmatpush2.msra.mxu0 0.0
    %1113 = vmatprep.subr.mxu0 0.0
    %1114 = vmatpush2.msra.mxu0 0.0
    %1115 = vmatprep.subr.mxu0 0.0
    %1116 = vmatpush2.msra.mxu0 0.0
    %1117 = vmatprep.subr.mxu0 0.0
    %1118 = vmatpush2.msra.mxu0 0.0
    %1119 = vmatprep.subr.mxu0 0.0
    %1120 = vmatpush2.msra.mxu0 0.0
    %1121 = vmatprep.subr.mxu0 0.0
    %1122 = vmatpush2.msra.mxu0 0.0
    %1123 = vmatprep.subr.mxu0 0.0
    %1124 = vmatpush2.msra.mxu0 0.0
    %1125 = vmatprep.subr.mxu0 0.0
    %1126 = vmatpush2.msra.mxu0 0.0
    %1127 = vmatprep.subr.mxu0 0.0
    %1128 = vmatpush2.msra.mxu0 0.0
    %1129 = vmatprep.subr.mxu0 0.0
    %1130 = vmatpush2.msra.mxu0 0.0
    %1131 = vmatprep.subr.mxu0 0.0
    %1132 = vmatpush2.msra.mxu0 0.0
    %1133 = vmatprep.subr.mxu0 0.0
    %1134 = vmatpush2.msra.mxu0 0.0
    %1135 = vmatprep.subr.mxu0 0.0
    %1136 = vmatpush2.msra.mxu0 0.0
    %1137 = vmatprep.subr.mxu0 0.0
    %1138 = vmatpush2.msra.mxu0 0.0
    %1139 = vmatprep.subr.mxu0 0.0
    %1140 = vmatpush2.msra.mxu0 0.0
    %1141 = vmatprep.subr.mxu0 0.0
    %1142 = vmatpush2.msra.mxu0 0.0
    %1143 = vmatprep.mubr.f32.mxu0 0.0
    %1144 = vmatmul.mubr.f32.gmra.mxu0 %v1007
    %v1145 = vpop.f32.mrf.mxu0
    %v1146 = vadd.f32 0.0, %v1145
    %v1147 = vpop.f32.mrf.mxu0
    %1148 = vdwg.mxu0
    %v1149 = vadd.f32 %v229, %v1075
    %v1150 = vxor.u32 %v1149, 2147483648
    %v1151 = vmul.f32 %v1150, 1.442695
    %v1152 = vpow.pop %v1151
    %v1153 = vadd.f32 %v1152, 1.0
    %v1154 = vrcp.pop %v1153
    %v1155 = vmul.f32 1.0, %v1154
    %v1156 = vadd.f32 %v231, %v1077
    %v1157 = vxor.u32 %v1156, 2147483648
    %v1158 = vmul.f32 %v1157, 1.442695
    %v1159 = vpow.pop %v1158
    %v1160 = vadd.f32 %v1159, 1.0
    %v1161 = vrcp.pop %v1160
    %v1162 = vmul.f32 1.0, %v1161
    %v1163 = vadd.f32 %v1146, %v103
    %v1164 = vmul.f32 %v1155, %v1163
    %v1165 = vadd.f32 %v338, %v1164
    %v1166 = vtanh.pop %v1165
    %v1167 = vsub.f32 1.0, %v1162
    %v1168 = vmul.f32 %v1167, %v1166
    %v1169 = vmul.f32 %v1162, %v1007
    %v1170 = vadd.f32 %v1168, %v1169
    %1171 = vmatprep.subr.mxu0 %v79
    %1172 = vmatpush1.msra.mxu0 %v78
    %1173 = vmatprep.subr.mxu0 %v76
    %1174 = vmatpush1.msra.mxu0 %v75
    %1175 = vmatprep.subr.mxu0 %v73
    %1176 = vmatpush1.msra.mxu0 %v72
    %1177 = vmatprep.subr.mxu0 %v70
    %1178 = vmatpush1.msra.mxu0 %v69
    %1179 = vmatprep.subr.mxu0 %v67
    %1180 = vmatpush1.msra.mxu0 %v66
    %1181 = vmatprep.subr.mxu0 %v64
    %1182 = vmatpush1.msra.mxu0 %v63
    %1183 = vmatprep.subr.mxu0 %v61
    %1184 = vmatpush1.msra.mxu0 %v60
    %1185 = vmatprep.subr.mxu0 %v58
    %1186 = vmatpush1.msra.mxu0 %v57
    %1187 = vmatprep.subr.mxu0 %v55
    %1188 = vmatpush1.msra.mxu0 %v54
    %1189 = vmatprep.subr.mxu0 %v52
    %1190 = vmatpush1.msra.mxu0 %v51
    %1191 = vmatprep.subr.mxu0 %v49
    %1192 = vmatpush1.msra.mxu0 %v48
    %1193 = vmatprep.subr.mxu0 %v46
    %1194 = vmatpush1.msra.mxu0 %v45
    %1195 = vmatprep.subr.mxu0 %v43
    %1196 = vmatpush1.msra.mxu0 %v42
    %1197 = vmatprep.subr.mxu0 %v40
    %1198 = vmatpush1.msra.mxu0 %v39
    %1199 = vmatprep.subr.mxu0 %v37
    %1200 = vmatpush1.msra.mxu0 %v36
    %1201 = vmatprep.subr.mxu0 %v34
    %1202 = vmatpush1.msra.mxu0 %v33
    %1203 = vmatprep.subr.mxu0 0.0
    %1204 = vmatpush2.msra.mxu0 0.0
    %1205 = vmatprep.subr.mxu0 0.0
    %1206 = vmatpush2.msra.mxu0 0.0
    %1207 = vmatprep.subr.mxu0 0.0
    %1208 = vmatpush2.msra.mxu0 0.0
    %1209 = vmatprep.subr.mxu0 0.0
    %1210 = vmatpush2.msra.mxu0 0.0
    %1211 = vmatprep.subr.mxu0 0.0
    %1212 = vmatpush2.msra.mxu0 0.0
    %1213 = vmatprep.subr.mxu0 0.0
    %1214 = vmatpush2.msra.mxu0 0.0
    %1215 = vmatprep.subr.mxu0 0.0
    %1216 = vmatpush2.msra.mxu0 0.0
    %1217 = vmatprep.subr.mxu0 0.0
    %1218 = vmatpush2.msra.mxu0 0.0
    %1219 = vmatprep.subr.mxu0 0.0
    %1220 = vmatpush2.msra.mxu0 0.0
    %1221 = vmatprep.subr.mxu0 0.0
    %1222 = vmatpush2.msra.mxu0 0.0
    %1223 = vmatprep.subr.mxu0 0.0
    %1224 = vmatpush2.msra.mxu0 0.0
    %1225 = vmatprep.subr.mxu0 0.0
    %1226 = vmatpush2.msra.mxu0 0.0
    %1227 = vmatprep.subr.mxu0 0.0
    %1228 = vmatpush2.msra.mxu0 0.0
    %1229 = vmatprep.subr.mxu0 0.0
    %1230 = vmatpush2.msra.mxu0 0.0
    %1231 = vmatprep.subr.mxu0 0.0
    %1232 = vmatpush2.msra.mxu0 0.0
    %1233 = vmatprep.subr.mxu0 0.0
    %1234 = vmatpush2.msra.mxu0 0.0
    %1235 = vmatprep.mubr.f32.mxu0 0.0
    %1236 = vmatmul.mubr.f32.gmra.mxu0 %v1170
    %v1237 = vpop.f32.mrf.mxu0
    %v1238 = vadd.f32 0.0, %v1237
    %v1239 = vpop.f32.mrf.mxu0
    %v1240 = vadd.f32 0.0, %v1239
    %1241 = vdwg.mxu0
    %1242 = vmatprep.subr.mxu0 0.0
    %1243 = vmatpush1.msra.mxu0 %v80
    %1244 = vmatprep.subr.mxu0 0.0
    %1245 = vmatpush1.msra.mxu0 %v77
    %1246 = vmatprep.subr.mxu0 0.0
    %1247 = vmatpush1.msra.mxu0 %v74
    %1248 = vmatprep.subr.mxu0 0.0
    %1249 = vmatpush1.msra.mxu0 %v71
    %1250 = vmatprep.subr.mxu0 0.0
    %1251 = vmatpush1.msra.mxu0 %v68
    %1252 = vmatprep.subr.mxu0 0.0
    %1253 = vmatpush1.msra.mxu0 %v65
    %1254 = vmatprep.subr.mxu0 0.0
    %1255 = vmatpush1.msra.mxu0 %v62
    %1256 = vmatprep.subr.mxu0 0.0
    %1257 = vmatpush1.msra.mxu0 %v59
    %1258 = vmatprep.subr.mxu0 0.0
    %1259 = vmatpush1.msra.mxu0 %v56
    %1260 = vmatprep.subr.mxu0 0.0
    %1261 = vmatpush1.msra.mxu0 %v53
    %1262 = vmatprep.subr.mxu0 0.0
    %1263 = vmatpush1.msra.mxu0 %v50
    %1264 = vmatprep.subr.mxu0 0.0
    %1265 = vmatpush1.msra.mxu0 %v47
    %1266 = vmatprep.subr.mxu0 0.0
    %1267 = vmatpush1.msra.mxu0 %v44
    %1268 = vmatprep.subr.mxu0 0.0
    %1269 = vmatpush1.msra.mxu0 %v41
    %1270 = vmatprep.subr.mxu0 0.0
    %1271 = vmatpush1.msra.mxu0 %v38
    %1272 = vmatprep.subr.mxu0 0.0
    %1273 = vmatpush1.msra.mxu0 %v35
    %1274 = vmatprep.subr.mxu0 0.0
    %1275 = vmatpush2.msra.mxu0 0.0
    %1276 = vmatprep.subr.mxu0 0.0
    %1277 = vmatpush2.msra.mxu0 0.0
    %1278 = vmatprep.subr.mxu0 0.0
    %1279 = vmatpush2.msra.mxu0 0.0
    %1280 = vmatprep.subr.mxu0 0.0
    %1281 = vmatpush2.msra.mxu0 0.0
    %1282 = vmatprep.subr.mxu0 0.0
    %1283 = vmatpush2.msra.mxu0 0.0
    %1284 = vmatprep.subr.mxu0 0.0
    %1285 = vmatpush2.msra.mxu0 0.0
    %1286 = vmatprep.subr.mxu0 0.0
    %1287 = vmatpush2.msra.mxu0 0.0
    %1288 = vmatprep.subr.mxu0 0.0
    %1289 = vmatpush2.msra.mxu0 0.0
    %1290 = vmatprep.subr.mxu0 0.0
    %1291 = vmatpush2.msra.mxu0 0.0
    %1292 = vmatprep.subr.mxu0 0.0
    %1293 = vmatpush2.msra.mxu0 0.0
    %1294 = vmatprep.subr.mxu0 0.0
    %1295 = vmatpush2.msra.mxu0 0.0
    %1296 = vmatprep.subr.mxu0 0.0
    %1297 = vmatpush2.msra.mxu0 0.0
    %1298 = vmatprep.subr.mxu0 0.0
    %1299 = vmatpush2.msra.mxu0 0.0
    %1300 = vmatprep.subr.mxu0 0.0
    %1301 = vmatpush2.msra.mxu0 0.0
    %1302 = vmatprep.subr.mxu0 0.0
    %1303 = vmatpush2.msra.mxu0 0.0
    %1304 = vmatprep.subr.mxu0 0.0
    %1305 = vmatpush2.msra.mxu0 0.0
    %1306 = vmatprep.mubr.f32.mxu0 0.0
    %1307 = vmatmul.mubr.f32.gmra.mxu0 %v1170
    %v1308 = vpop.f32.mrf.mxu0
    %v1309 = vadd.f32 0.0, %v1308
    %v1310 = vpop.f32.mrf.mxu0
    %1311 = vdwg.mxu0
    %v1312 = vadd.f32 %v235, %v1238
    %v1313 = vxor.u32 %v1312, 2147483648
    %v1314 = vmul.f32 %v1313, 1.442695
    %v1315 = vpow.pop %v1314
    %v1316 = vadd.f32 %v1315, 1.0
    %v1317 = vrcp.pop %v1316
    %v1318 = vmul.f32 1.0, %v1317
    %v1319 = vadd.f32 %v237, %v1240
    %v1320 = vxor.u32 %v1319, 2147483648
    %v1321 = vmul.f32 %v1320, 1.442695
    %v1322 = vpow.pop %v1321
    %v1323 = vadd.f32 %v1322, 1.0
    %v1324 = vrcp.pop %v1323
    %v1325 = vmul.f32 1.0, %v1324
    %v1326 = vadd.f32 %v1309, %v103
    %v1327 = vmul.f32 %v1318, %v1326
    %v1328 = vadd.f32 %v343, %v1327
    %v1329 = vtanh.pop %v1328
    %v1330 = vsub.f32 1.0, %v1325
    %v1331 = vmul.f32 %v1330, %v1329
    %v1332 = vmul.f32 %v1325, %v1170
    %v1333 = vadd.f32 %v1331, %v1332
    %1334 = vmatprep.subr.mxu0 %v79
    %1335 = vmatpush1.msra.mxu0 %v78
    %1336 = vmatprep.subr.mxu0 %v76
    %1337 = vmatpush1.msra.mxu0 %v75
    %1338 = vmatprep.subr.mxu0 %v73
    %1339 = vmatpush1.msra.mxu0 %v72
    %1340 = vmatprep.subr.mxu0 %v70
    %1341 = vmatpush1.msra.mxu0 %v69
    %1342 = vmatprep.subr.mxu0 %v67
    %1343 = vmatpush1.msra.mxu0 %v66
    %1344 = vmatprep.subr.mxu0 %v64
    %1345 = vmatpush1.msra.mxu0 %v63
    %1346 = vmatprep.subr.mxu0 %v61
    %1347 = vmatpush1.msra.mxu0 %v60
    %1348 = vmatprep.subr.mxu0 %v58
    %1349 = vmatpush1.msra.mxu0 %v57
    %1350 = vmatprep.subr.mxu0 %v55
    %1351 = vmatpush1.msra.mxu0 %v54
    %1352 = vmatprep.subr.mxu0 %v52
    %1353 = vmatpush1.msra.mxu0 %v51
    %1354 = vmatprep.subr.mxu0 %v49
    %1355 = vmatpush1.msra.mxu0 %v48
    %1356 = vmatprep.subr.mxu0 %v46
    %1357 = vmatpush1.msra.mxu0 %v45
    %1358 = vmatprep.subr.mxu0 %v43
    %1359 = vmatpush1.msra.mxu0 %v42
    %1360 = vmatprep.subr.mxu0 %v40
    %1361 = vmatpush1.msra.mxu0 %v39
    %1362 = vmatprep.subr.mxu0 %v37
    %1363 = vmatpush1.msra.mxu0 %v36
    %1364 = vmatprep.subr.mxu0 %v34
    %1365 = vmatpush1.msra.mxu0 %v33
    %1366 = vmatprep.subr.mxu0 0.0
    %1367 = vmatpush2.msra.mxu0 0.0
    %1368 = vmatprep.subr.mxu0 0.0
    %1369 = vmatpush2.msra.mxu0 0.0
    %1370 = vmatprep.subr.mxu0 0.0
    %1371 = vmatpush2.msra.mxu0 0.0
    %1372 = vmatprep.subr.mxu0 0.0
    %1373 = vmatpush2.msra.mxu0 0.0
    %1374 = vmatprep.subr.mxu0 0.0
    %1375 = vmatpush2.msra.mxu0 0.0
    %1376 = vmatprep.subr.mxu0 0.0
    %1377 = vmatpush2.msra.mxu0 0.0
    %1378 = vmatprep.subr.mxu0 0.0
    %1379 = vmatpush2.msra.mxu0 0.0
    %1380 = vmatprep.subr.mxu0 0.0
    %1381 = vmatpush2.msra.mxu0 0.0
    %1382 = vmatprep.subr.mxu0 0.0
    %1383 = vmatpush2.msra.mxu0 0.0
    %1384 = vmatprep.subr.mxu0 0.0
    %1385 = vmatpush2.msra.mxu0 0.0
    %1386 = vmatprep.subr.mxu0 0.0
    %1387 = vmatpush2.msra.mxu0 0.0
    %1388 = vmatprep.subr.mxu0 0.0
    %1389 = vmatpush2.msra.mxu0 0.0
    %1390 = vmatprep.subr.mxu0 0.0
    %1391 = vmatpush2.msra.mxu0 0.0
    %1392 = vmatprep.subr.mxu0 0.0
    %1393 = vmatpush2.msra.mxu0 0.0
    %1394 = vmatprep.subr.mxu0 0.0
    %1395 = vmatpush2.msra.mxu0 0.0
    %1396 = vmatprep.subr.mxu0 0.0
    %1397 = vmatpush2.msra.mxu0 0.0
    %1398 = vmatprep.mubr.f32.mxu0 0.0
    %1399 = vmatmul.mubr.f32.gmra.mxu0 %v1333
    %v1400 = vpop.f32.mrf.mxu0
    %v1401 = vadd.f32 0.0, %v1400
    %v1402 = vpop.f32.mrf.mxu0
    %v1403 = vadd.f32 0.0, %v1402
    %1404 = vdwg.mxu0
    %1405 = vmatprep.subr.mxu0 0.0
    %1406 = vmatpush1.msra.mxu0 %v80
    %1407 = vmatprep.subr.mxu0 0.0
    %1408 = vmatpush1.msra.mxu0 %v77
    %1409 = vmatprep.subr.mxu0 0.0
    %1410 = vmatpush1.msra.mxu0 %v74
    %1411 = vmatprep.subr.mxu0 0.0
    %1412 = vmatpush1.msra.mxu0 %v71
    %1413 = vmatprep.subr.mxu0 0.0
    %1414 = vmatpush1.msra.mxu0 %v68
    %1415 = vmatprep.subr.mxu0 0.0
    %1416 = vmatpush1.msra.mxu0 %v65
    %1417 = vmatprep.subr.mxu0 0.0
    %1418 = vmatpush1.msra.mxu0 %v62
    %1419 = vmatprep.subr.mxu0 0.0
    %1420 = vmatpush1.msra.mxu0 %v59
    %1421 = vmatprep.subr.mxu0 0.0
    %1422 = vmatpush1.msra.mxu0 %v56
    %1423 = vmatprep.subr.mxu0 0.0
    %1424 = vmatpush1.msra.mxu0 %v53
    %1425 = vmatprep.subr.mxu0 0.0
    %1426 = vmatpush1.msra.mxu0 %v50
    %1427 = vmatprep.subr.mxu0 0.0
    %1428 = vmatpush1.msra.mxu0 %v47
    %1429 = vmatprep.subr.mxu0 0.0
    %1430 = vmatpush1.msra.mxu0 %v44
    %1431 = vmatprep.subr.mxu0 0.0
    %1432 = vmatpush1.msra.mxu0 %v41
    %1433 = vmatprep.subr.mxu0 0.0
    %1434 = vmatpush1.msra.mxu0 %v38
    %1435 = vmatprep.subr.mxu0 0.0
    %1436 = vmatpush1.msra.mxu0 %v35
    %1437 = vmatprep.subr.mxu0 0.0
    %1438 = vmatpush2.msra.mxu0 0.0
    %1439 = vmatprep.subr.mxu0 0.0
    %1440 = vmatpush2.msra.mxu0 0.0
    %1441 = vmatprep.subr.mxu0 0.0
    %1442 = vmatpush2.msra.mxu0 0.0
    %1443 = vmatprep.subr.mxu0 0.0
    %1444 = vmatpush2.msra.mxu0 0.0
    %1445 = vmatprep.subr.mxu0 0.0
    %1446 = vmatpush2.msra.mxu0 0.0
    %1447 = vmatprep.subr.mxu0 0.0
    %1448 = vmatpush2.msra.mxu0 0.0
    %1449 = vmatprep.subr.mxu0 0.0
    %1450 = vmatpush2.msra.mxu0 0.0
    %1451 = vmatprep.subr.mxu0 0.0
    %1452 = vmatpush2.msra.mxu0 0.0
    %1453 = vmatprep.subr.mxu0 0.0
    %1454 = vmatpush2.msra.mxu0 0.0
    %1455 = vmatprep.subr.mxu0 0.0
    %1456 = vmatpush2.msra.mxu0 0.0
    %1457 = vmatprep.subr.mxu0 0.0
    %1458 = vmatpush2.msra.mxu0 0.0
    %1459 = vmatprep.subr.mxu0 0.0
    %1460 = vmatpush2.msra.mxu0 0.0
    %1461 = vmatprep.subr.mxu0 0.0
    %1462 = vmatpush2.msra.mxu0 0.0
    %1463 = vmatprep.subr.mxu0 0.0
    %1464 = vmatpush2.msra.mxu0 0.0
    %1465 = vmatprep.subr.mxu0 0.0
    %1466 = vmatpush2.msra.mxu0 0.0
    %1467 = vmatprep.subr.mxu0 0.0
    %1468 = vmatpush2.msra.mxu0 0.0
    %1469 = vmatprep.mubr.f32.mxu0 0.0
    %1470 = vmatmul.mubr.f32.gmra.mxu0 %v1333
    %v1471 = vpop.f32.mrf.mxu0
    %v1472 = vadd.f32 0.0, %v1471
    %v1473 = vpop.f32.mrf.mxu0
    %1474 = vdwg.mxu0
    %v1475 = vadd.f32 %v241, %v1401
    %v1476 = vxor.u32 %v1475, 2147483648
    %v1477 = vmul.f32 %v1476, 1.442695
    %v1478 = vpow.pop %v1477
    %v1479 = vadd.f32 %v1478, 1.0
    %v1480 = vrcp.pop %v1479
    %v1481 = vmul.f32 1.0, %v1480
    %v1482 = vadd.f32 %v243, %v1403
    %v1483 = vxor.u32 %v1482, 2147483648
    %v1484 = vmul.f32 %v1483, 1.442695
    %v1485 = vpow.pop %v1484
    %v1486 = vadd.f32 %v1485, 1.0
    %v1487 = vrcp.pop %v1486
    %v1488 = vmul.f32 1.0, %v1487
    %v1489 = vadd.f32 %v1472, %v103
    %v1490 = vmul.f32 %v1481, %v1489
    %v1491 = vadd.f32 %v348, %v1490
    %v1492 = vtanh.pop %v1491
    %v1493 = vsub.f32 1.0, %v1488
    %v1494 = vmul.f32 %v1493, %v1492
    %v1495 = vmul.f32 %v1488, %v1333
    %v1496 = vadd.f32 %v1494, %v1495
    %1497 = vmatprep.subr.mxu0 %v79
    %1498 = vmatpush1.msra.mxu0 %v78
    %1499 = vmatprep.subr.mxu0 %v76
    %1500 = vmatpush1.msra.mxu0 %v75
    %1501 = vmatprep.subr.mxu0 %v73
    %1502 = vmatpush1.msra.mxu0 %v72
    %1503 = vmatprep.subr.mxu0 %v70
    %1504 = vmatpush1.msra.mxu0 %v69
    %1505 = vmatprep.subr.mxu0 %v67
    %1506 = vmatpush1.msra.mxu0 %v66
    %1507 = vmatprep.subr.mxu0 %v64
    %1508 = vmatpush1.msra.mxu0 %v63
    %1509 = vmatprep.subr.mxu0 %v61
    %1510 = vmatpush1.msra.mxu0 %v60
    %1511 = vmatprep.subr.mxu0 %v58
    %1512 = vmatpush1.msra.mxu0 %v57
    %1513 = vmatprep.subr.mxu0 %v55
    %1514 = vmatpush1.msra.mxu0 %v54
    %1515 = vmatprep.subr.mxu0 %v52
    %1516 = vmatpush1.msra.mxu0 %v51
    %1517 = vmatprep.subr.mxu0 %v49
    %1518 = vmatpush1.msra.mxu0 %v48
    %1519 = vmatprep.subr.mxu0 %v46
    %1520 = vmatpush1.msra.mxu0 %v45
    %1521 = vmatprep.subr.mxu0 %v43
    %1522 = vmatpush1.msra.mxu0 %v42
    %1523 = vmatprep.subr.mxu0 %v40
    %1524 = vmatpush1.msra.mxu0 %v39
    %1525 = vmatprep.subr.mxu0 %v37
    %1526 = vmatpush1.msra.mxu0 %v36
    %1527 = vmatprep.subr.mxu0 %v34
    %1528 = vmatpush1.msra.mxu0 %v33
    %1529 = vmatprep.subr.mxu0 0.0
    %1530 = vmatpush2.msra.mxu0 0.0
    %1531 = vmatprep.subr.mxu0 0.0
    %1532 = vmatpush2.msra.mxu0 0.0
    %1533 = vmatprep.subr.mxu0 0.0
    %1534 = vmatpush2.msra.mxu0 0.0
    %1535 = vmatprep.subr.mxu0 0.0
    %1536 = vmatpush2.msra.mxu0 0.0
    %1537 = vmatprep.subr.mxu0 0.0
    %1538 = vmatpush2.msra.mxu0 0.0
    %1539 = vmatprep.subr.mxu0 0.0
    %1540 = vmatpush2.msra.mxu0 0.0
    %1541 = vmatprep.subr.mxu0 0.0
    %1542 = vmatpush2.msra.mxu0 0.0
    %1543 = vmatprep.subr.mxu0 0.0
    %1544 = vmatpush2.msra.mxu0 0.0
    %1545 = vmatprep.subr.mxu0 0.0
    %1546 = vmatpush2.msra.mxu0 0.0
    %1547 = vmatprep.subr.mxu0 0.0
    %1548 = vmatpush2.msra.mxu0 0.0
    %1549 = vmatprep.subr.mxu0 0.0
    %1550 = vmatpush2.msra.mxu0 0.0
    %1551 = vmatprep.subr.mxu0 0.0
    %1552 = vmatpush2.msra.mxu0 0.0
    %1553 = vmatprep.subr.mxu0 0.0
    %1554 = vmatpush2.msra.mxu0 0.0
    %1555 = vmatprep.subr.mxu0 0.0
    %1556 = vmatpush2.msra.mxu0 0.0
    %1557 = vmatprep.subr.mxu0 0.0
    %1558 = vmatpush2.msra.mxu0 0.0
    %1559 = vmatprep.subr.mxu0 0.0
    %1560 = vmatpush2.msra.mxu0 0.0
    %1561 = vmatprep.mubr.f32.mxu0 0.0
    %1562 = vmatmul.mubr.f32.gmra.mxu0 %v1496
    %v1563 = vpop.f32.mrf.mxu0
    %v1564 = vadd.f32 0.0, %v1563
    %v1565 = vpop.f32.mrf.mxu0
    %v1566 = vadd.f32 0.0, %v1565
    %1567 = vdwg.mxu0
    %1568 = vmatprep.subr.mxu0 0.0
    %1569 = vmatpush1.msra.mxu0 %v80
    %1570 = vmatprep.subr.mxu0 0.0
    %1571 = vmatpush1.msra.mxu0 %v77
    %1572 = vmatprep.subr.mxu0 0.0
    %1573 = vmatpush1.msra.mxu0 %v74
    %1574 = vmatprep.subr.mxu0 0.0
    %1575 = vmatpush1.msra.mxu0 %v71
    %1576 = vmatprep.subr.mxu0 0.0
    %1577 = vmatpush1.msra.mxu0 %v68
    %1578 = vmatprep.subr.mxu0 0.0
    %1579 = vmatpush1.msra.mxu0 %v65
    %1580 = vmatprep.subr.mxu0 0.0
    %1581 = vmatpush1.msra.mxu0 %v62
    %1582 = vmatprep.subr.mxu0 0.0
    %1583 = vmatpush1.msra.mxu0 %v59
    %1584 = vmatprep.subr.mxu0 0.0
    %1585 = vmatpush1.msra.mxu0 %v56
    %1586 = vmatprep.subr.mxu0 0.0
    %1587 = vmatpush1.msra.mxu0 %v53
    %1588 = vmatprep.subr.mxu0 0.0
    %1589 = vmatpush1.msra.mxu0 %v50
    %1590 = vmatprep.subr.mxu0 0.0
    %1591 = vmatpush1.msra.mxu0 %v47
    %1592 = vmatprep.subr.mxu0 0.0
    %1593 = vmatpush1.msra.mxu0 %v44
    %1594 = vmatprep.subr.mxu0 0.0
    %1595 = vmatpush1.msra.mxu0 %v41
    %1596 = vmatprep.subr.mxu0 0.0
    %1597 = vmatpush1.msra.mxu0 %v38
    %1598 = vmatprep.subr.mxu0 0.0
    %1599 = vmatpush1.msra.mxu0 %v35
    %1600 = vmatprep.subr.mxu0 0.0
    %1601 = vmatpush2.msra.mxu0 0.0
    %1602 = vmatprep.subr.mxu0 0.0
    %1603 = vmatpush2.msra.mxu0 0.0
    %1604 = vmatprep.subr.mxu0 0.0
    %1605 = vmatpush2.msra.mxu0 0.0
    %1606 = vmatprep.subr.mxu0 0.0
    %1607 = vmatpush2.msra.mxu0 0.0
    %1608 = vmatprep.subr.mxu0 0.0
    %1609 = vmatpush2.msra.mxu0 0.0
    %1610 = vmatprep.subr.mxu0 0.0
    %1611 = vmatpush2.msra.mxu0 0.0
    %1612 = vmatprep.subr.mxu0 0.0
    %1613 = vmatpush2.msra.mxu0 0.0
    %1614 = vmatprep.subr.mxu0 0.0
    %1615 = vmatpush2.msra.mxu0 0.0
    %1616 = vmatprep.subr.mxu0 0.0
    %1617 = vmatpush2.msra.mxu0 0.0
    %1618 = vmatprep.subr.mxu0 0.0
    %1619 = vmatpush2.msra.mxu0 0.0
    %1620 = vmatprep.subr.mxu0 0.0
    %1621 = vmatpush2.msra.mxu0 0.0
    %1622 = vmatprep.subr.mxu0 0.0
    %1623 = vmatpush2.msra.mxu0 0.0
    %1624 = vmatprep.subr.mxu0 0.0
    %1625 = vmatpush2.msra.mxu0 0.0
    %1626 = vmatprep.subr.mxu0 0.0
    %1627 = vmatpush2.msra.mxu0 0.0
    %1628 = vmatprep.subr.mxu0 0.0
    %1629 = vmatpush2.msra.mxu0 0.0
    %1630 = vmatprep.subr.mxu0 0.0
    %1631 = vmatpush2.msra.mxu0 0.0
    %1632 = vmatprep.mubr.f32.mxu0 0.0
    %1633 = vmatmul.mubr.f32.gmra.mxu0 %v1496
    %v1634 = vpop.f32.mrf.mxu0
    %v1635 = vadd.f32 0.0, %v1634
    %v1636 = vpop.f32.mrf.mxu0
    %1637 = vdwg.mxu0
    %v1638 = vadd.f32 %v247, %v1564
    %v1639 = vxor.u32 %v1638, 2147483648
    %v1640 = vmul.f32 %v1639, 1.442695
    %v1641 = vpow.pop %v1640
    %v1642 = vadd.f32 %v1641, 1.0
    %v1643 = vrcp.pop %v1642
    %v1644 = vmul.f32 1.0, %v1643
    %v1645 = vadd.f32 %v249, %v1566
    %v1646 = vxor.u32 %v1645, 2147483648
    %v1647 = vmul.f32 %v1646, 1.442695
    %v1648 = vpow.pop %v1647
    %v1649 = vadd.f32 %v1648, 1.0
    %v1650 = vrcp.pop %v1649
    %v1651 = vmul.f32 1.0, %v1650
    %v1652 = vadd.f32 %v1635, %v103
    %v1653 = vmul.f32 %v1644, %v1652
    %v1654 = vadd.f32 %v353, %v1653
    %v1655 = vtanh.pop %v1654
    %v1656 = vsub.f32 1.0, %v1651
    %v1657 = vmul.f32 %v1656, %v1655
    %v1658 = vmul.f32 %v1651, %v1496
    %v1659 = vadd.f32 %v1657, %v1658
    %vm1660 = vcmask 254976
    %1661 = vst.msk [vmem:[#allocation2] sm:$0x3] %vm1660, %v1659
    // Predicated region
    $region22: #{question_embedding_forward.1} parent=1 // pred_check
      _
    $region23: #{question_embedding_forward.1} parent=1 // pred_check_branch
      %1663 = sbr.rel (0) target = $region25
    $region24: #{question_embedding_forward.1} parent=1 // pred_region
      %s1665 = ssub.s32 32, 32
      %1666 = vsyncadd [#allocation3], %s1665
      %s1668 = sshll.u32 [#allocation2], 4
      %s1669 = int_to_ptr.vmem [resolvable:$true] %s1668
      %1671 = dma.vmem_to_hbm [thread:$0]  %s1669, 32, %s5, [#allocation3]
    $region25: #{question_embedding_forward.1} parent=1 // pred_fallthru
      _
    // Predicated region
    $region26: #{question_embedding_forward.1} parent=1 // pred_check
      _
    $region27: #{question_embedding_forward.1} parent=1 // pred_check_branch
      %1673 = sbr.rel (0) target = $region29
    $region28: #{question_embedding_forward.1} parent=1 // pred_region
      %1674 = dma.done [#allocation3], 32
    $region29: #{question_embedding_forward.1} parent=1 // pred_fallthru
      _
    %1675 = vsyncpa [#allocation3], 1

</llo_original>
